<compile_context>
chip_gen: v7x
topology: tpu7x:2x2x1
jax: 0.10.0
libtpu: 0.0.40
codegen_flags: <defaults>
</compile_context>

<pallas_src>
import functools

import jax
import jax.numpy as jnp
from jax import lax
from jax.experimental import pallas as pl
from jax.experimental.pallas import tpu as pltpu

LANE = 128


def _round_up(x, m):
    return (x + m - 1) // m * m


def _pad2d(x, shape):
    pads = [(0, t - s) for s, t in zip(x.shape, shape)]
    return jnp.pad(x, pads)


# ----------------------------------------------------------------------------
# Fused kernel: [ffn -> local_attn -> ffn] x depth  ->  RMSNorm -> logits
# One grid step == one block of B_blk sequences; everything stays in VMEM.
# ----------------------------------------------------------------------------
def _fused_llm_kernel(x_ref, w1_ref, b1_ref, w2_ref, b2_ref,
                      g_ref, wo_ref, bo_ref, o_ref, *, depth, true_dim):
    bb, n, dp = x_ref.shape
    t = bb * n
    # Flatten the batch block so FFN / logits matmuls see a (bb*n)-row LHS.
    x = x_ref[...].astype(jnp.float32).reshape(t, dp)         # padded lanes are 0
    scale = true_dim ** -0.5

    # --- masks hoisted: built once per kernel invocation, reused by every layer
    row = lax.broadcasted_iota(jnp.int32, (t, t), 0)
    col = lax.broadcasted_iota(jnp.int32, (t, t), 1)
    same_seq = None                       # block-diagonal (per-sequence) mask
    for s in range(bb):                   # static, tiny; avoids vector int div
        rs = (row >= s * n) & (row < (s + 1) * n)
        cs = (col >= s * n) & (col < (s + 1) * n)
        blk = rs & cs
        same_seq = blk if same_seq is None else (same_seq | blk)
    keep = same_seq & (col < row)         # strictly-causal, same-sequence keeps sim
    # everything not kept: self-token -> -5e-4 (shared_qk), else -1e30
    masked_val = jnp.where(col == row, jnp.float32(-5e-4), jnp.float32(-1e30))

    def ffn(x, li):
        xb = x.astype(jnp.bfloat16)
        h = jnp.dot(xb, w1_ref[li].astype(jnp.bfloat16),
                    preferred_element_type=jnp.float32) + b1_ref[li]
        # TODO(synk): PyTorch nn.GELU defaults to the exact (erf) form; tanh
        # approximation kept for a guaranteed Mosaic lowering (tiny delta).
        h = jax.nn.gelu(h, approximate=True)
        y = jnp.dot(h.astype(jnp.bfloat16), w2_ref[li].astype(jnp.bfloat16),
                    preferred_element_type=jnp.float32) + b2_ref[li]
        return y + x                                          # fused residual

    def local_attn(x):
        # shared_qk: keys are the l2-normalized queries (== l2norm(x)); v == x
        q = x * scale
        sumsq = jnp.sum(x * x, axis=-1, keepdims=True)
        k = x * lax.rsqrt(jnp.maximum(sumsq, 1e-24))          # EUP rsqrt, f32
        sim = lax.dot_general(q.astype(jnp.bfloat16), k.astype(jnp.bfloat16),
                              (((1,), (1,)), ((), ())),
                              preferred_element_type=jnp.float32)   # (t, t)
        sim = jnp.where(keep, sim, masked_val)                # causal+block-diag+self
        m = jnp.max(sim, axis=-1, keepdims=True)
        p = jnp.exp(sim - m)
        a = p * pl.reciprocal(jnp.sum(p, axis=-1, keepdims=True))   # exact recip
        out = jnp.dot(a.astype(jnp.bfloat16), x.astype(jnp.bfloat16),
                      preferred_element_type=jnp.float32)
        return out + x                                        # fused residual
        # TODO(synk): lucidrains LocalAttention also applies rotary positional
        # embeddings by default; omitted (class source not provided).

    for li in range(depth):                                   # depth static -> unrolled
        x = ffn(x, li)
        x = local_attn(x)
        x = ffn(x, li)                                        # same FFN weights twice (as in torch)

    # RMSNorm (L2 norm * dim^-0.5, clamped) + Linear to logits
    sumsq = jnp.sum(x * x, axis=-1, keepdims=True)
    norm = jnp.sqrt(sumsq) * scale
    xn = x * pl.reciprocal(jnp.maximum(norm, 1e-8)) * g_ref[...]
    y = jnp.dot(xn.astype(jnp.bfloat16), wo_ref[...].astype(jnp.bfloat16),
                preferred_element_type=jnp.float32) + bo_ref[...]
    o_ref[...] = y.reshape(bb, n, -1).astype(o_ref.dtype)


def _num_grid_steps(B):
    # v7x has 2 TensorCores/chip -> 2 parallel steps; v5e/v6e have 1 TC -> 1 step.
    try:
        kind = jax.devices()[0].device_kind.lower()
    except Exception:  # pragma: no cover - defensive
        kind = ""
    if "v7" in kind and B % 2 == 0:
        return 2
    return 1


def fused_llm_forward(params, tokens, *, true_dim, true_vocab):
    B, N = tokens.shape
    Dp = params["emb"].shape[1]
    depth, _, Hp = params["w1"].shape
    Vp = params["w_out"].shape[1]

    # Embedding gather (glue), (B, N, Dp).
    # TODO(synk): at model scale fuse this via PrefetchScalarGridSpec(tokens)
    # + a pl.Element row-gather BlockSpec on emb to avoid the HBM round-trip.
    x = params["emb"][tokens]

    steps = _num_grid_steps(B)
    Bb = B // steps

    # Advisory cost estimate for XLA scheduling around the fused call.
    M = B * N
    flops = (depth * (2 * (2 * M * Dp * Hp + 2 * M * Hp * Dp)      # 2 FFNs / layer
                      + 2 * (2 * M * N * Dp))                       # attn sim + out
             + 2 * M * Dp * Vp)                                     # logits
    transcendentals = depth * (2 * M * Hp + 2 * M * N + M) + M
    bytes_accessed = 4 * (x.size + params["w1"].size + params["b1"].size
                          + params["w2"].size + params["b2"].size
                          + params["g"].size + params["w_out"].size
                          + params["b_out"].size + B * N * Vp)

    kernel = functools.partial(_fused_llm_kernel, depth=depth, true_dim=true_dim)
    logits_p = pl.pallas_call(
        kernel,
        out_shape=jax.ShapeDtypeStruct((B, N, Vp), jnp.float32),
        grid=(steps,),
        in_specs=[
            pl.BlockSpec((Bb, N, Dp), lambda b: (b, 0, 0)),        # x (batch block)
            pl.BlockSpec((depth, Dp, Hp), lambda b: (0, 0, 0)),    # W1 (all layers, resident)
            pl.BlockSpec((depth, 1, Hp), lambda b: (0, 0, 0)),     # b1
            pl.BlockSpec((depth, Hp, Dp), lambda b: (0, 0, 0)),    # W2
            pl.BlockSpec((depth, 1, Dp), lambda b: (0, 0, 0)),     # b2
            pl.BlockSpec((1, Dp), lambda b: (0, 0)),               # RMSNorm gain
            pl.BlockSpec((Dp, Vp), lambda b: (0, 0)),              # W_out
            pl.BlockSpec((1, Vp), lambda b: (0, 0)),               # b_out
        ],
        out_specs=pl.BlockSpec((Bb, N, Vp), lambda b: (b, 0, 0)),
        compiler_params=pltpu.CompilerParams(
            dimension_semantics=("parallel",),                     # both TCs on v7x
            vmem_limit_bytes=32 * 1024 * 1024),
        cost_estimate=pl.CostEstimate(
            flops=flops, transcendentals=transcendentals,
            bytes_accessed=bytes_accessed),
    )(x, params["w1"], params["b1"], params["w2"], params["b2"],
      params["g"], params["w_out"], params["b_out"])
    return logits_p[:, :, :true_vocab]                        # drop lane padding of V


def llm_forward(params, tokens, img, *, true_dim, true_vocab):
    # TODO(synk): BraveMultiModalFusion source was not provided in the reference
    # module; image fusion is skipped and `img` is unused.
    del img
    return fused_llm_forward(params, tokens, true_dim=true_dim, true_vocab=true_vocab)


# ----------------------------------------------------------------------------
# Parameter construction (deterministic, in-script), lane-padded to 128
# ----------------------------------------------------------------------------
def init_params(key, *, dim, depth, num_tokens, ff_mult_inner=2):
    Dp = max(_round_up(dim, LANE), LANE)
    hidden = dim * ff_mult_inner          # TransformerBlock's FeedForward default mult=2
    Hp = max(_round_up(hidden, LANE), LANE)
    Vp = max(_round_up(num_tokens, LANE), LANE)

    keys = jax.random.split(key, 2 + depth)
    emb = 0.02 * jax.random.normal(keys[0], (num_tokens, dim), jnp.float32)
    w1s, w2s = [], []
    for li in range(depth):
        k1, k2 = jax.random.split(keys[2 + li])
        w1s.append(_pad2d(0.02 * jax.random.normal(k1, (dim, hidden), jnp.float32), (Dp, Hp)))
        w2s.append(_pad2d(0.02 * jax.random.normal(k2, (hidden, dim), jnp.float32), (Hp, Dp)))
    w_out = _pad2d(0.02 * jax.random.normal(keys[1], (dim, num_tokens), jnp.float32), (Dp, Vp))

    return dict(
        emb=_pad2d(emb, (num_tokens, Dp)),            # zero-padded lanes stay zero everywhere
        w1=jnp.stack(w1s),                            # (depth, Dp, Hp)
        b1=jnp.zeros((depth, 1, Hp), jnp.float32),
        b2=jnp.zeros((depth, 1, Dp), jnp.float32),
        w2=jnp.stack(w2s),                            # (depth, Hp, Dp)
        g=_pad2d(jnp.ones((1, dim), jnp.float32), (1, Dp)),
        w_out=w_out,                                  # (Dp, Vp)
        b_out=jnp.zeros((1, Vp), jnp.float32),
    )


# ----------------------------------------------------------------------------
# Pure-JAX reference (f32 math) for a correctness sanity check
# ----------------------------------------------------------------------------
def reference_forward(params, tokens, *, true_dim, true_vocab):
    x = params["emb"][tokens].astype(jnp.float32)     # (B, N, Dp)
    depth = params["w1"].shape[0]
    _, N, _ = x.shape
    scale = true_dim ** -0.5
    row = jnp.arange(N)[:, None]
    col = jnp.arange(N)[None, :]
    causal, diag = col > row, col == row

    def ffn(x, li):
        h = jax.nn.gelu(x @ params["w1"][li] + params["b1"][li], approximate=True)
        return h @ params["w2"][li] + params["b2"][li] + x

    def attn(x):
        q = x * scale
        k = x / jnp.maximum(jnp.linalg.norm(x, axis=-1, keepdims=True), 1e-12)
        sim = jnp.einsum("bnd,bmd->bnm", q, k)
        sim = jnp.where(causal[None], -1e30, sim)
        sim = jnp.where(diag[None], -5e-4, sim)
        return jnp.einsum("bnm,bmd->bnd", jax.nn.softmax(sim, axis=-1), x) + x

    for li in range(depth):
        x = ffn(x, li)
        x = attn(x)
        x = ffn(x, li)

    norm = jnp.linalg.norm(x, axis=-1, keepdims=True) * scale
    xn = x / jnp.maximum(norm, 1e-8) * params["g"]
    logits = xn @ params["w_out"] + params["b_out"]
    return logits[:, :, :true_vocab]


if __name__ == "__main__":
    # Small shapes consistent with the module:
    #   dim=32, depth=2, num_tokens=64, heads=8 (=> window_size=8), seq=8, batch=2
    B, N = 2, 8
    DIM, DEPTH, NUM_TOKENS = 32, 2, 64
    IMG_SIZE = 64  # small stand-in for image_size

    key = jax.random.PRNGKey(0)
    k_par, k_tok, k_img = jax.random.split(key, 3)

    params = init_params(k_par, dim=DIM, depth=DEPTH, num_tokens=NUM_TOKENS)
    tokens = jax.random.randint(k_tok, (B, N), 0, NUM_TOKENS, dtype=jnp.int32)
    img = jax.random.normal(k_img, (B, 3, IMG_SIZE, IMG_SIZE), jnp.float32)  # NCHW

    fwd = jax.jit(functools.partial(llm_forward, true_dim=DIM, true_vocab=NUM_TOKENS))
    logits = fwd(params, tokens, img)
    jax.block_until_ready(logits)

    assert logits.shape == (B, N, NUM_TOKENS), logits.shape
    assert bool(jnp.all(jnp.isfinite(logits)))

    ref = reference_forward(params, tokens, true_dim=DIM, true_vocab=NUM_TOKENS)
    max_err = float(jnp.max(jnp.abs(logits - ref)))
    assert max_err < 3e-2, max_err   # loose: bf16 MXU operands vs f32 reference

    print("KERNEL_OK")
</pallas_src>

<mosaic_0001>
module attributes {stable_mosaic.version = 11 : i64} {
  func.func @_fused_llm_kernel(%arg0: i32, %arg1: memref<2x8x128xf32, #tpu.memory_space<vmem>>, %arg2: memref<2x128x128xf32, #tpu.memory_space<vmem>>, %arg3: memref<2x1x128xf32, #tpu.memory_space<vmem>>, %arg4: memref<2x128x128xf32, #tpu.memory_space<vmem>>, %arg5: memref<2x1x128xf32, #tpu.memory_space<vmem>>, %arg6: memref<1x128xf32, #tpu.memory_space<vmem>>, %arg7: memref<128x128xf32, #tpu.memory_space<vmem>>, %arg8: memref<1x128xf32, #tpu.memory_space<vmem>>, %arg9: memref<2x8x128xf32, #tpu.memory_space<vmem>>) attributes {dimension_semantics = [#tpu.dimension_semantics<parallel>], iteration_bounds = array<i64: 1>, scalar_prefetch = 0 : i64, scratch_operands = 0 : i64, tpu.core_type = #tpu.core_type<tc>, window_params = [{transform_indices = @transform_0, window_bounds = array<i64: 2, 8, 128>}, {pipeline_mode = #tpu.pipeline_mode<synchronous>, transform_indices = @transform_1, window_bounds = array<i64: 2, 128, 128>}, {pipeline_mode = #tpu.pipeline_mode<synchronous>, transform_indices = @transform_2, window_bounds = array<i64: 2, 1, 128>}, {pipeline_mode = #tpu.pipeline_mode<synchronous>, transform_indices = @transform_3, window_bounds = array<i64: 2, 128, 128>}, {pipeline_mode = #tpu.pipeline_mode<synchronous>, transform_indices = @transform_4, window_bounds = array<i64: 2, 1, 128>}, {pipeline_mode = #tpu.pipeline_mode<synchronous>, transform_indices = @transform_5, window_bounds = array<i64: 1, 128>}, {pipeline_mode = #tpu.pipeline_mode<synchronous>, transform_indices = @transform_6, window_bounds = array<i64: 128, 128>}, {pipeline_mode = #tpu.pipeline_mode<synchronous>, transform_indices = @transform_7, window_bounds = array<i64: 1, 128>}, {transform_indices = @transform_8, window_bounds = array<i64: 2, 8, 128>}]} {
    %c0 = arith.constant 0 : index
    %c0_0 = arith.constant 0 : index
    %c0_1 = arith.constant 0 : index
    %0 = vector.load %arg1[%c0, %c0_0, %c0_1] : memref<2x8x128xf32, #tpu.memory_space<vmem>>, vector<2x8x128xf32>
    %1 = vector.shape_cast %0 : vector<2x8x128xf32> to vector<16x128xf32>
    %2 = tpu.iota {dimensions = array<i32: 0>} : vector<16x16xi32>
    %3 = tpu.iota {dimensions = array<i32: 1>} : vector<16x16xi32>
    %c0_i32 = arith.constant 0 : i32
    %4 = vector.broadcast %c0_i32 : i32 to vector<16x16xi32>
    %5 = arith.cmpi sge, %2, %4 : vector<16x16xi32>
    %c8_i32 = arith.constant 8 : i32
    %6 = vector.broadcast %c8_i32 : i32 to vector<16x16xi32>
    %7 = arith.cmpi slt, %2, %6 : vector<16x16xi32>
    %8 = arith.andi %5, %7 : vector<16x16xi1>
    %c0_i32_2 = arith.constant 0 : i32
    %9 = vector.broadcast %c0_i32_2 : i32 to vector<16x16xi32>
    %10 = arith.cmpi sge, %3, %9 : vector<16x16xi32>
    %c8_i32_3 = arith.constant 8 : i32
    %11 = vector.broadcast %c8_i32_3 : i32 to vector<16x16xi32>
    %12 = arith.cmpi slt, %3, %11 : vector<16x16xi32>
    %13 = arith.andi %10, %12 : vector<16x16xi1>
    %14 = arith.andi %8, %13 : vector<16x16xi1>
    %c8_i32_4 = arith.constant 8 : i32
    %15 = vector.broadcast %c8_i32_4 : i32 to vector<16x16xi32>
    %16 = arith.cmpi sge, %2, %15 : vector<16x16xi32>
    %c16_i32 = arith.constant 16 : i32
    %17 = vector.broadcast %c16_i32 : i32 to vector<16x16xi32>
    %18 = arith.cmpi slt, %2, %17 : vector<16x16xi32>
    %19 = arith.andi %16, %18 : vector<16x16xi1>
    %c8_i32_5 = arith.constant 8 : i32
    %20 = vector.broadcast %c8_i32_5 : i32 to vector<16x16xi32>
    %21 = arith.cmpi sge, %3, %20 : vector<16x16xi32>
    %c16_i32_6 = arith.constant 16 : i32
    %22 = vector.broadcast %c16_i32_6 : i32 to vector<16x16xi32>
    %23 = arith.cmpi slt, %3, %22 : vector<16x16xi32>
    %24 = arith.andi %21, %23 : vector<16x16xi1>
    %25 = arith.andi %19, %24 : vector<16x16xi1>
    %26 = arith.ori %14, %25 : vector<16x16xi1>
    %27 = arith.cmpi slt, %3, %2 : vector<16x16xi32>
    %28 = arith.andi %26, %27 : vector<16x16xi1>
    %29 = arith.cmpi eq, %3, %2 : vector<16x16xi32>
    %cst = arith.constant -5.000000e-04 : f32
    %cst_7 = arith.constant -1.000000e+30 : f32
    %30 = vector.broadcast %cst : f32 to vector<16x16xf32>
    %31 = vector.broadcast %cst_7 : f32 to vector<16x16xf32>
    %32 = arith.select %29, %30, %31 : vector<16x16xi1>, vector<16x16xf32>
    %33 = arith.truncf %1 : vector<16x128xf32> to vector<16x128xbf16>
    %c0_8 = arith.constant 0 : index
    %c0_9 = arith.constant 0 : index
    %c0_10 = arith.constant 0 : index
    %34 = vector.load %arg2[%c0_8, %c0_9, %c0_10] : memref<2x128x128xf32, #tpu.memory_space<vmem>>, vector<1x128x128xf32>
    %35 = vector.shape_cast %34 : vector<1x128x128xf32> to vector<128x128xf32>
    %36 = arith.truncf %35 : vector<128x128xf32> to vector<128x128xbf16>
    %cst_11 = arith.constant dense<0.000000e+00> : vector<16x128xf32>
    %37 = tpu.matmul %33, %36, %cst_11 {dimension_numbers = #tpu.dot_dimension_numbers<[1], [0], [0], [1], [0, 0, 1, 1], [], []>} : vector<16x128xbf16>, vector<128x128xbf16>, vector<16x128xf32> -> vector<16x128xf32>
    %c0_12 = arith.constant 0 : index
    %c0_13 = arith.constant 0 : index
    %c0_14 = arith.constant 0 : index
    %38 = vector.load %arg3[%c0_12, %c0_13, %c0_14] : memref<2x1x128xf32, #tpu.memory_space<vmem>>, vector<1x1x128xf32>
    %39 = vector.shape_cast %38 : vector<1x1x128xf32> to vector<1x128xf32>
    %40 = vector.broadcast %39 : vector<1x128xf32> to vector<16x128xf32>
    %41 = arith.addf %37, %40 : vector<16x128xf32>
    %42 = arith.mulf %41, %41 : vector<16x128xf32>
    %43 = arith.mulf %41, %42 : vector<16x128xf32>
    %cst_15 = arith.constant 4.471500e-02 : f32
    %44 = vector.broadcast %cst_15 : f32 to vector<16x128xf32>
    %45 = arith.mulf %44, %43 : vector<16x128xf32>
    %46 = arith.addf %41, %45 : vector<16x128xf32>
    %cst_16 = arith.constant 0.797884583 : f32
    %47 = vector.broadcast %cst_16 : f32 to vector<16x128xf32>
    %48 = arith.mulf %47, %46 : vector<16x128xf32>
    %49 = math.tanh %48 : vector<16x128xf32>
    %cst_17 = arith.constant 1.000000e+00 : f32
    %50 = vector.broadcast %cst_17 : f32 to vector<16x128xf32>
    %51 = arith.addf %50, %49 : vector<16x128xf32>
    %cst_18 = arith.constant 5.000000e-01 : f32
    %52 = vector.broadcast %cst_18 : f32 to vector<16x128xf32>
    %53 = arith.mulf %52, %51 : vector<16x128xf32>
    %54 = arith.mulf %41, %53 : vector<16x128xf32>
    %55 = arith.truncf %54 : vector<16x128xf32> to vector<16x128xbf16>
    %c0_19 = arith.constant 0 : index
    %c0_20 = arith.constant 0 : index
    %c0_21 = arith.constant 0 : index
    %56 = vector.load %arg4[%c0_19, %c0_20, %c0_21] : memref<2x128x128xf32, #tpu.memory_space<vmem>>, vector<1x128x128xf32>
    %57 = vector.shape_cast %56 : vector<1x128x128xf32> to vector<128x128xf32>
    %58 = arith.truncf %57 : vector<128x128xf32> to vector<128x128xbf16>
    %cst_22 = arith.constant dense<0.000000e+00> : vector<16x128xf32>
    %59 = tpu.matmul %55, %58, %cst_22 {dimension_numbers = #tpu.dot_dimension_numbers<[1], [0], [0], [1], [0, 0, 1, 1], [], []>} : vector<16x128xbf16>, vector<128x128xbf16>, vector<16x128xf32> -> vector<16x128xf32>
    %c0_23 = arith.constant 0 : index
    %c0_24 = arith.constant 0 : index
    %c0_25 = arith.constant 0 : index
    %60 = vector.load %arg5[%c0_23, %c0_24, %c0_25] : memref<2x1x128xf32, #tpu.memory_space<vmem>>, vector<1x1x128xf32>
    %61 = vector.shape_cast %60 : vector<1x1x128xf32> to vector<1x128xf32>
    %62 = vector.broadcast %61 : vector<1x128xf32> to vector<16x128xf32>
    %63 = arith.addf %59, %62 : vector<16x128xf32>
    %64 = arith.addf %63, %1 : vector<16x128xf32>
    %cst_26 = arith.constant 0.176776692 : f32
    %65 = vector.broadcast %cst_26 : f32 to vector<16x128xf32>
    %66 = arith.mulf %64, %65 : vector<16x128xf32>
    %67 = arith.mulf %64, %64 : vector<16x128xf32>
    %cst_27 = arith.constant dense<0.000000e+00> : vector<16xf32>
    %68 = vector.multi_reduction <add>, %67, %cst_27 [1] : vector<16x128xf32> to vector<16xf32>
    %69 = vector.shape_cast %68 : vector<16xf32> to vector<16x1xf32>
    %cst_28 = arith.constant 1.000000e-24 : f32
    %70 = vector.broadcast %cst_28 : f32 to vector<16x1xf32>
    %71 = arith.maximumf %69, %70 : vector<16x1xf32>
    %72 = math.rsqrt %71 : vector<16x1xf32>
    %73 = vector.broadcast %72 : vector<16x1xf32> to vector<16x128xf32>
    %74 = arith.mulf %64, %73 : vector<16x128xf32>
    %75 = arith.truncf %66 : vector<16x128xf32> to vector<16x128xbf16>
    %76 = arith.truncf %74 : vector<16x128xf32> to vector<16x128xbf16>
    %cst_29 = arith.constant dense<0.000000e+00> : vector<16x16xf32>
    %77 = tpu.matmul %75, %76, %cst_29 {dimension_numbers = #tpu.dot_dimension_numbers<[1], [1], [0], [0], [0, 0, 1, 0], [], []>} : vector<16x128xbf16>, vector<16x128xbf16>, vector<16x16xf32> -> vector<16x16xf32>
    %78 = arith.select %28, %77, %32 : vector<16x16xi1>, vector<16x16xf32>
    %cst_30 = arith.constant dense<0xFF800000> : vector<16xf32>
    %79 = vector.multi_reduction <maximumf>, %78, %cst_30 [1] : vector<16x16xf32> to vector<16xf32>
    %80 = vector.shape_cast %79 : vector<16xf32> to vector<16x1xf32>
    %81 = vector.broadcast %80 : vector<16x1xf32> to vector<16x16xf32>
    %82 = arith.subf %78, %81 : vector<16x16xf32>
    %83 = math.exp %82 : vector<16x16xf32>
    %cst_31 = arith.constant dense<0.000000e+00> : vector<16xf32>
    %84 = vector.multi_reduction <add>, %83, %cst_31 [1] : vector<16x16xf32> to vector<16xf32>
    %85 = vector.shape_cast %84 : vector<16xf32> to vector<16x1xf32>
    %86 = tpu.reciprocal %85 : vector<16x1xf32> -> vector<16x1xf32>
    %87 = vector.broadcast %86 : vector<16x1xf32> to vector<16x16xf32>
    %88 = arith.mulf %83, %87 : vector<16x16xf32>
    %89 = arith.truncf %88 : vector<16x16xf32> to vector<16x16xbf16>
    %90 = arith.truncf %64 : vector<16x128xf32> to vector<16x128xbf16>
    %cst_32 = arith.constant dense<0.000000e+00> : vector<16x128xf32>
    %91 = tpu.matmul %89, %90, %cst_32 {dimension_numbers = #tpu.dot_dimension_numbers<[1], [0], [0], [1], [0, 0, 1, 1], [], []>} : vector<16x16xbf16>, vector<16x128xbf16>, vector<16x128xf32> -> vector<16x128xf32>
    %92 = arith.addf %91, %64 : vector<16x128xf32>
    %93 = arith.truncf %92 : vector<16x128xf32> to vector<16x128xbf16>
    %c0_33 = arith.constant 0 : index
    %c0_34 = arith.constant 0 : index
    %c0_35 = arith.constant 0 : index
    %94 = vector.load %arg2[%c0_33, %c0_34, %c0_35] : memref<2x128x128xf32, #tpu.memory_space<vmem>>, vector<1x128x128xf32>
    %95 = vector.shape_cast %94 : vector<1x128x128xf32> to vector<128x128xf32>
    %96 = arith.truncf %95 : vector<128x128xf32> to vector<128x128xbf16>
    %cst_36 = arith.constant dense<0.000000e+00> : vector<16x128xf32>
    %97 = tpu.matmul %93, %96, %cst_36 {dimension_numbers = #tpu.dot_dimension_numbers<[1], [0], [0], [1], [0, 0, 1, 1], [], []>} : vector<16x128xbf16>, vector<128x128xbf16>, vector<16x128xf32> -> vector<16x128xf32>
    %c0_37 = arith.constant 0 : index
    %c0_38 = arith.constant 0 : index
    %c0_39 = arith.constant 0 : index
    %98 = vector.load %arg3[%c0_37, %c0_38, %c0_39] : memref<2x1x128xf32, #tpu.memory_space<vmem>>, vector<1x1x128xf32>
    %99 = vector.shape_cast %98 : vector<1x1x128xf32> to vector<1x128xf32>
    %100 = vector.broadcast %99 : vector<1x128xf32> to vector<16x128xf32>
    %101 = arith.addf %97, %100 : vector<16x128xf32>
    %102 = arith.mulf %101, %101 : vector<16x128xf32>
    %103 = arith.mulf %101, %102 : vector<16x128xf32>
    %cst_40 = arith.constant 4.471500e-02 : f32
    %104 = vector.broadcast %cst_40 : f32 to vector<16x128xf32>
    %105 = arith.mulf %104, %103 : vector<16x128xf32>
    %106 = arith.addf %101, %105 : vector<16x128xf32>
    %cst_41 = arith.constant 0.797884583 : f32
    %107 = vector.broadcast %cst_41 : f32 to vector<16x128xf32>
    %108 = arith.mulf %107, %106 : vector<16x128xf32>
    %109 = math.tanh %108 : vector<16x128xf32>
    %cst_42 = arith.constant 1.000000e+00 : f32
    %110 = vector.broadcast %cst_42 : f32 to vector<16x128xf32>
    %111 = arith.addf %110, %109 : vector<16x128xf32>
    %cst_43 = arith.constant 5.000000e-01 : f32
    %112 = vector.broadcast %cst_43 : f32 to vector<16x128xf32>
    %113 = arith.mulf %112, %111 : vector<16x128xf32>
    %114 = arith.mulf %101, %113 : vector<16x128xf32>
    %115 = arith.truncf %114 : vector<16x128xf32> to vector<16x128xbf16>
    %c0_44 = arith.constant 0 : index
    %c0_45 = arith.constant 0 : index
    %c0_46 = arith.constant 0 : index
    %116 = vector.load %arg4[%c0_44, %c0_45, %c0_46] : memref<2x128x128xf32, #tpu.memory_space<vmem>>, vector<1x128x128xf32>
    %117 = vector.shape_cast %116 : vector<1x128x128xf32> to vector<128x128xf32>
    %118 = arith.truncf %117 : vector<128x128xf32> to vector<128x128xbf16>
    %cst_47 = arith.constant dense<0.000000e+00> : vector<16x128xf32>
    %119 = tpu.matmul %115, %118, %cst_47 {dimension_numbers = #tpu.dot_dimension_numbers<[1], [0], [0], [1], [0, 0, 1, 1], [], []>} : vector<16x128xbf16>, vector<128x128xbf16>, vector<16x128xf32> -> vector<16x128xf32>
    %c0_48 = arith.constant 0 : index
    %c0_49 = arith.constant 0 : index
    %c0_50 = arith.constant 0 : index
    %120 = vector.load %arg5[%c0_48, %c0_49, %c0_50] : memref<2x1x128xf32, #tpu.memory_space<vmem>>, vector<1x1x128xf32>
    %121 = vector.shape_cast %120 : vector<1x1x128xf32> to vector<1x128xf32>
    %122 = vector.broadcast %121 : vector<1x128xf32> to vector<16x128xf32>
    %123 = arith.addf %119, %122 : vector<16x128xf32>
    %124 = arith.addf %123, %92 : vector<16x128xf32>
    %125 = arith.truncf %124 : vector<16x128xf32> to vector<16x128xbf16>
    %c1 = arith.constant 1 : index
    %c0_51 = arith.constant 0 : index
    %c0_52 = arith.constant 0 : index
    %126 = vector.load %arg2[%c1, %c0_51, %c0_52] : memref<2x128x128xf32, #tpu.memory_space<vmem>>, vector<1x128x128xf32>
    %127 = vector.shape_cast %126 : vector<1x128x128xf32> to vector<128x128xf32>
    %128 = arith.truncf %127 : vector<128x128xf32> to vector<128x128xbf16>
    %cst_53 = arith.constant dense<0.000000e+00> : vector<16x128xf32>
    %129 = tpu.matmul %125, %128, %cst_53 {dimension_numbers = #tpu.dot_dimension_numbers<[1], [0], [0], [1], [0, 0, 1, 1], [], []>} : vector<16x128xbf16>, vector<128x128xbf16>, vector<16x128xf32> -> vector<16x128xf32>
    %c1_54 = arith.constant 1 : index
    %c0_55 = arith.constant 0 : index
    %c0_56 = arith.constant 0 : index
    %130 = vector.load %arg3[%c1_54, %c0_55, %c0_56] : memref<2x1x128xf32, #tpu.memory_space<vmem>>, vector<1x1x128xf32>
    %131 = vector.shape_cast %130 : vector<1x1x128xf32> to vector<1x128xf32>
    %132 = vector.broadcast %131 : vector<1x128xf32> to vector<16x128xf32>
    %133 = arith.addf %129, %132 : vector<16x128xf32>
    %134 = arith.mulf %133, %133 : vector<16x128xf32>
    %135 = arith.mulf %133, %134 : vector<16x128xf32>
    %cst_57 = arith.constant 4.471500e-02 : f32
    %136 = vector.broadcast %cst_57 : f32 to vector<16x128xf32>
    %137 = arith.mulf %136, %135 : vector<16x128xf32>
    %138 = arith.addf %133, %137 : vector<16x128xf32>
    %cst_58 = arith.constant 0.797884583 : f32
    %139 = vector.broadcast %cst_58 : f32 to vector<16x128xf32>
    %140 = arith.mulf %139, %138 : vector<16x128xf32>
    %141 = math.tanh %140 : vector<16x128xf32>
    %cst_59 = arith.constant 1.000000e+00 : f32
    %142 = vector.broadcast %cst_59 : f32 to vector<16x128xf32>
    %143 = arith.addf %142, %141 : vector<16x128xf32>
    %cst_60 = arith.constant 5.000000e-01 : f32
    %144 = vector.broadcast %cst_60 : f32 to vector<16x128xf32>
    %145 = arith.mulf %144, %143 : vector<16x128xf32>
    %146 = arith.mulf %133, %145 : vector<16x128xf32>
    %147 = arith.truncf %146 : vector<16x128xf32> to vector<16x128xbf16>
    %c1_61 = arith.constant 1 : index
    %c0_62 = arith.constant 0 : index
    %c0_63 = arith.constant 0 : index
    %148 = vector.load %arg4[%c1_61, %c0_62, %c0_63] : memref<2x128x128xf32, #tpu.memory_space<vmem>>, vector<1x128x128xf32>
    %149 = vector.shape_cast %148 : vector<1x128x128xf32> to vector<128x128xf32>
    %150 = arith.truncf %149 : vector<128x128xf32> to vector<128x128xbf16>
    %cst_64 = arith.constant dense<0.000000e+00> : vector<16x128xf32>
    %151 = tpu.matmul %147, %150, %cst_64 {dimension_numbers = #tpu.dot_dimension_numbers<[1], [0], [0], [1], [0, 0, 1, 1], [], []>} : vector<16x128xbf16>, vector<128x128xbf16>, vector<16x128xf32> -> vector<16x128xf32>
    %c1_65 = arith.constant 1 : index
    %c0_66 = arith.constant 0 : index
    %c0_67 = arith.constant 0 : index
    %152 = vector.load %arg5[%c1_65, %c0_66, %c0_67] : memref<2x1x128xf32, #tpu.memory_space<vmem>>, vector<1x1x128xf32>
    %153 = vector.shape_cast %152 : vector<1x1x128xf32> to vector<1x128xf32>
    %154 = vector.broadcast %153 : vector<1x128xf32> to vector<16x128xf32>
    %155 = arith.addf %151, %154 : vector<16x128xf32>
    %156 = arith.addf %155, %124 : vector<16x128xf32>
    %cst_68 = arith.constant 0.176776692 : f32
    %157 = vector.broadcast %cst_68 : f32 to vector<16x128xf32>
    %158 = arith.mulf %156, %157 : vector<16x128xf32>
    %159 = arith.mulf %156, %156 : vector<16x128xf32>
    %cst_69 = arith.constant dense<0.000000e+00> : vector<16xf32>
    %160 = vector.multi_reduction <add>, %159, %cst_69 [1] : vector<16x128xf32> to vector<16xf32>
    %161 = vector.shape_cast %160 : vector<16xf32> to vector<16x1xf32>
    %cst_70 = arith.constant 1.000000e-24 : f32
    %162 = vector.broadcast %cst_70 : f32 to vector<16x1xf32>
    %163 = arith.maximumf %161, %162 : vector<16x1xf32>
    %164 = math.rsqrt %163 : vector<16x1xf32>
    %165 = vector.broadcast %164 : vector<16x1xf32> to vector<16x128xf32>
    %166 = arith.mulf %156, %165 : vector<16x128xf32>
    %167 = arith.truncf %158 : vector<16x128xf32> to vector<16x128xbf16>
    %168 = arith.truncf %166 : vector<16x128xf32> to vector<16x128xbf16>
    %cst_71 = arith.constant dense<0.000000e+00> : vector<16x16xf32>
    %169 = tpu.matmul %167, %168, %cst_71 {dimension_numbers = #tpu.dot_dimension_numbers<[1], [1], [0], [0], [0, 0, 1, 0], [], []>} : vector<16x128xbf16>, vector<16x128xbf16>, vector<16x16xf32> -> vector<16x16xf32>
    %170 = arith.select %28, %169, %32 : vector<16x16xi1>, vector<16x16xf32>
    %cst_72 = arith.constant dense<0xFF800000> : vector<16xf32>
    %171 = vector.multi_reduction <maximumf>, %170, %cst_72 [1] : vector<16x16xf32> to vector<16xf32>
    %172 = vector.shape_cast %171 : vector<16xf32> to vector<16x1xf32>
    %173 = vector.broadcast %172 : vector<16x1xf32> to vector<16x16xf32>
    %174 = arith.subf %170, %173 : vector<16x16xf32>
    %175 = math.exp %174 : vector<16x16xf32>
    %cst_73 = arith.constant dense<0.000000e+00> : vector<16xf32>
    %176 = vector.multi_reduction <add>, %175, %cst_73 [1] : vector<16x16xf32> to vector<16xf32>
    %177 = vector.shape_cast %176 : vector<16xf32> to vector<16x1xf32>
    %178 = tpu.reciprocal %177 : vector<16x1xf32> -> vector<16x1xf32>
    %179 = vector.broadcast %178 : vector<16x1xf32> to vector<16x16xf32>
    %180 = arith.mulf %175, %179 : vector<16x16xf32>
    %181 = arith.truncf %180 : vector<16x16xf32> to vector<16x16xbf16>
    %182 = arith.truncf %156 : vector<16x128xf32> to vector<16x128xbf16>
    %cst_74 = arith.constant dense<0.000000e+00> : vector<16x128xf32>
    %183 = tpu.matmul %181, %182, %cst_74 {dimension_numbers = #tpu.dot_dimension_numbers<[1], [0], [0], [1], [0, 0, 1, 1], [], []>} : vector<16x16xbf16>, vector<16x128xbf16>, vector<16x128xf32> -> vector<16x128xf32>
    %184 = arith.addf %183, %156 : vector<16x128xf32>
    %185 = arith.truncf %184 : vector<16x128xf32> to vector<16x128xbf16>
    %c1_75 = arith.constant 1 : index
    %c0_76 = arith.constant 0 : index
    %c0_77 = arith.constant 0 : index
    %186 = vector.load %arg2[%c1_75, %c0_76, %c0_77] : memref<2x128x128xf32, #tpu.memory_space<vmem>>, vector<1x128x128xf32>
    %187 = vector.shape_cast %186 : vector<1x128x128xf32> to vector<128x128xf32>
    %188 = arith.truncf %187 : vector<128x128xf32> to vector<128x128xbf16>
    %cst_78 = arith.constant dense<0.000000e+00> : vector<16x128xf32>
    %189 = tpu.matmul %185, %188, %cst_78 {dimension_numbers = #tpu.dot_dimension_numbers<[1], [0], [0], [1], [0, 0, 1, 1], [], []>} : vector<16x128xbf16>, vector<128x128xbf16>, vector<16x128xf32> -> vector<16x128xf32>
    %c1_79 = arith.constant 1 : index
    %c0_80 = arith.constant 0 : index
    %c0_81 = arith.constant 0 : index
    %190 = vector.load %arg3[%c1_79, %c0_80, %c0_81] : memref<2x1x128xf32, #tpu.memory_space<vmem>>, vector<1x1x128xf32>
    %191 = vector.shape_cast %190 : vector<1x1x128xf32> to vector<1x128xf32>
    %192 = vector.broadcast %191 : vector<1x128xf32> to vector<16x128xf32>
    %193 = arith.addf %189, %192 : vector<16x128xf32>
    %194 = arith.mulf %193, %193 : vector<16x128xf32>
    %195 = arith.mulf %193, %194 : vector<16x128xf32>
    %cst_82 = arith.constant 4.471500e-02 : f32
    %196 = vector.broadcast %cst_82 : f32 to vector<16x128xf32>
    %197 = arith.mulf %196, %195 : vector<16x128xf32>
    %198 = arith.addf %193, %197 : vector<16x128xf32>
    %cst_83 = arith.constant 0.797884583 : f32
    %199 = vector.broadcast %cst_83 : f32 to vector<16x128xf32>
    %200 = arith.mulf %199, %198 : vector<16x128xf32>
    %201 = math.tanh %200 : vector<16x128xf32>
    %cst_84 = arith.constant 1.000000e+00 : f32
    %202 = vector.broadcast %cst_84 : f32 to vector<16x128xf32>
    %203 = arith.addf %202, %201 : vector<16x128xf32>
    %cst_85 = arith.constant 5.000000e-01 : f32
    %204 = vector.broadcast %cst_85 : f32 to vector<16x128xf32>
    %205 = arith.mulf %204, %203 : vector<16x128xf32>
    %206 = arith.mulf %193, %205 : vector<16x128xf32>
    %207 = arith.truncf %206 : vector<16x128xf32> to vector<16x128xbf16>
    %c1_86 = arith.constant 1 : index
    %c0_87 = arith.constant 0 : index
    %c0_88 = arith.constant 0 : index
    %208 = vector.load %arg4[%c1_86, %c0_87, %c0_88] : memref<2x128x128xf32, #tpu.memory_space<vmem>>, vector<1x128x128xf32>
    %209 = vector.shape_cast %208 : vector<1x128x128xf32> to vector<128x128xf32>
    %210 = arith.truncf %209 : vector<128x128xf32> to vector<128x128xbf16>
    %cst_89 = arith.constant dense<0.000000e+00> : vector<16x128xf32>
    %211 = tpu.matmul %207, %210, %cst_89 {dimension_numbers = #tpu.dot_dimension_numbers<[1], [0], [0], [1], [0, 0, 1, 1], [], []>} : vector<16x128xbf16>, vector<128x128xbf16>, vector<16x128xf32> -> vector<16x128xf32>
    %c1_90 = arith.constant 1 : index
    %c0_91 = arith.constant 0 : index
    %c0_92 = arith.constant 0 : index
    %212 = vector.load %arg5[%c1_90, %c0_91, %c0_92] : memref<2x1x128xf32, #tpu.memory_space<vmem>>, vector<1x1x128xf32>
    %213 = vector.shape_cast %212 : vector<1x1x128xf32> to vector<1x128xf32>
    %214 = vector.broadcast %213 : vector<1x128xf32> to vector<16x128xf32>
    %215 = arith.addf %211, %214 : vector<16x128xf32>
    %216 = arith.addf %215, %184 : vector<16x128xf32>
    %217 = arith.mulf %216, %216 : vector<16x128xf32>
    %cst_93 = arith.constant dense<0.000000e+00> : vector<16xf32>
    %218 = vector.multi_reduction <add>, %217, %cst_93 [1] : vector<16x128xf32> to vector<16xf32>
    %219 = vector.shape_cast %218 : vector<16xf32> to vector<16x1xf32>
    %220 = math.sqrt %219 : vector<16x1xf32>
    %cst_94 = arith.constant 0.176776692 : f32
    %221 = vector.broadcast %cst_94 : f32 to vector<16x1xf32>
    %222 = arith.mulf %220, %221 : vector<16x1xf32>
    %cst_95 = arith.constant 9.99999993E-9 : f32
    %223 = vector.broadcast %cst_95 : f32 to vector<16x1xf32>
    %224 = arith.maximumf %222, %223 : vector<16x1xf32>
    %225 = tpu.reciprocal %224 : vector<16x1xf32> -> vector<16x1xf32>
    %226 = vector.broadcast %225 : vector<16x1xf32> to vector<16x128xf32>
    %227 = arith.mulf %216, %226 : vector<16x128xf32>
    %c0_96 = arith.constant 0 : index
    %c0_97 = arith.constant 0 : index
    %228 = vector.load %arg6[%c0_96, %c0_97] : memref<1x128xf32, #tpu.memory_space<vmem>>, vector<1x128xf32>
    %229 = vector.broadcast %228 : vector<1x128xf32> to vector<16x128xf32>
    %230 = arith.mulf %227, %229 : vector<16x128xf32>
    %231 = arith.truncf %230 : vector<16x128xf32> to vector<16x128xbf16>
    %c0_98 = arith.constant 0 : index
    %c0_99 = arith.constant 0 : index
    %232 = vector.load %arg7[%c0_98, %c0_99] : memref<128x128xf32, #tpu.memory_space<vmem>>, vector<128x128xf32>
    %233 = arith.truncf %232 : vector<128x128xf32> to vector<128x128xbf16>
    %cst_100 = arith.constant dense<0.000000e+00> : vector<16x128xf32>
    %234 = tpu.matmul %231, %233, %cst_100 {dimension_numbers = #tpu.dot_dimension_numbers<[1], [0], [0], [1], [0, 0, 1, 1], [], []>} : vector<16x128xbf16>, vector<128x128xbf16>, vector<16x128xf32> -> vector<16x128xf32>
    %c0_101 = arith.constant 0 : index
    %c0_102 = arith.constant 0 : index
    %235 = vector.load %arg8[%c0_101, %c0_102] : memref<1x128xf32, #tpu.memory_space<vmem>>, vector<1x128xf32>
    %236 = vector.broadcast %235 : vector<1x128xf32> to vector<16x128xf32>
    %237 = arith.addf %234, %236 : vector<16x128xf32>
    %238 = vector.shape_cast %237 : vector<16x128xf32> to vector<2x8x128xf32>
    %c0_103 = arith.constant 0 : index
    %c0_104 = arith.constant 0 : index
    %c0_105 = arith.constant 0 : index
    %239 = vector.load %arg9[%c0_103, %c0_104, %c0_105] : memref<2x8x128xf32, #tpu.memory_space<vmem>>, vector<2x8x128xf32>
    tpu.vector_store %arg9[%c0_103, %c0_104, %c0_105], %238 {strides = array<i32>} : memref<2x8x128xf32, #tpu.memory_space<vmem>>, vector<2x8x128xf32>,
    return
  }
  func.func @transform_0(%arg0: i32) -> (i32, i32, i32) {
    %c0_i32 = arith.constant 0 : i32
    %c0_i32_0 = arith.constant 0 : i32
    %c0_i32_1 = arith.constant 0 : i32
    return %arg0, %c0_i32, %c0_i32_0 : i32, i32, i32
  }
  func.func @transform_1(%arg0: i32) -> (i32, i32, i32) {
    %c0_i32 = arith.constant 0 : i32
    %c0_i32_0 = arith.constant 0 : i32
    %c0_i32_1 = arith.constant 0 : i32
    %c0_i32_2 = arith.constant 0 : i32
    return %c0_i32, %c0_i32_0, %c0_i32_1 : i32, i32, i32
  }
  func.func @transform_2(%arg0: i32) -> (i32, i32, i32) {
    %c0_i32 = arith.constant 0 : i32
    %c0_i32_0 = arith.constant 0 : i32
    %c0_i32_1 = arith.constant 0 : i32
    %c0_i32_2 = arith.constant 0 : i32
    return %c0_i32, %c0_i32_0, %c0_i32_1 : i32, i32, i32
  }
  func.func @transform_3(%arg0: i32) -> (i32, i32, i32) {
    %c0_i32 = arith.constant 0 : i32
    %c0_i32_0 = arith.constant 0 : i32
    %c0_i32_1 = arith.constant 0 : i32
    %c0_i32_2 = arith.constant 0 : i32
    return %c0_i32, %c0_i32_0, %c0_i32_1 : i32, i32, i32
  }
  func.func @transform_4(%arg0: i32) -> (i32, i32, i32) {
    %c0_i32 = arith.constant 0 : i32
    %c0_i32_0 = arith.constant 0 : i32
    %c0_i32_1 = arith.constant 0 : i32
    %c0_i32_2 = arith.constant 0 : i32
    return %c0_i32, %c0_i32_0, %c0_i32_1 : i32, i32, i32
  }
  func.func @transform_5(%arg0: i32) -> (i32, i32) {
    %c0_i32 = arith.constant 0 : i32
    %c0_i32_0 = arith.constant 0 : i32
    %c0_i32_1 = arith.constant 0 : i32
    return %c0_i32, %c0_i32_0 : i32, i32
  }
  func.func @transform_6(%arg0: i32) -> (i32, i32) {
    %c0_i32 = arith.constant 0 : i32
    %c0_i32_0 = arith.constant 0 : i32
    %c0_i32_1 = arith.constant 0 : i32
    return %c0_i32, %c0_i32_0 : i32, i32
  }
  func.func @transform_7(%arg0: i32) -> (i32, i32) {
    %c0_i32 = arith.constant 0 : i32
    %c0_i32_0 = arith.constant 0 : i32
    %c0_i32_1 = arith.constant 0 : i32
    return %c0_i32, %c0_i32_0 : i32, i32
  }
  func.func @transform_8(%arg0: i32) -> (i32, i32, i32) {
    %c0_i32 = arith.constant 0 : i32
    %c0_i32_0 = arith.constant 0 : i32
    %c0_i32_1 = arith.constant 0 : i32
    return %arg0, %c0_i32, %c0_i32_0 : i32, i32, i32
  }
}

</mosaic_0001>

<llo_original>
// kernel: llm_forward.1
$region0: #{llm_forward.1}
  #allocation0 [shape = 'u32[]', space=smem, size = 0x4, offset = 0x4, fixed_abs, tag = 'smem constant byte address 0x4 - core index']
  #allocation1 [shape = 'u32[144,128]{1,0:T(1,128)}', space=vmem, size = 0x12000, scoped, tag = 'internal scratch']
  %s0 = inlined_call_operand.vmem [shape: f32[2,8,128], index: 0, kind: input, shape index: {}]
  %s1 = inlined_call_operand.hbm [shape: f32[2,128,128], index: 1, kind: input, shape index: {}]
  %s2 = inlined_call_operand.vmem [shape: f32[2,1,128], index: 2, kind: input, shape index: {}]
  %s3 = inlined_call_operand.hbm [shape: f32[2,128,128], index: 3, kind: input, shape index: {}]
  %s4 = inlined_call_operand.vmem [shape: f32[2,1,128], index: 4, kind: input, shape index: {}]
  %s5 = inlined_call_operand.vmem [shape: f32[1,128], index: 5, kind: input, shape index: {}]
  %s6 = inlined_call_operand.vmem [shape: f32[128,128], index: 6, kind: input, shape index: {}]
  %s7 = inlined_call_operand.vmem [shape: f32[1,128], index: 7, kind: input, shape index: {}]
  %s8 = inlined_call_operand.hbm [shape: f32[2,8,128], index: 8, kind: output, shape index: {}]
  %s9 = sld [smem:[#allocation0]]
  $region50: #{llm_forward.1} parent=0
    _
  %s11 = ssub.s32 1, %s9
  %s12 = scalar_select 0, %s11, %s9
  $region1: #{llm_forward.1} parent=0
    #allocation2 [shape = 'u8[131072]{0}', space=vmem, size = 0x20000, scoped, tag = 'input window, operand 1, single buffered']
    #allocation3 [shape = 's32[1]{0}', space=sflag, size = 0x4, scoped, tag = 'scoped memory for llm_forward.1']
    #allocation4 [shape = 's32[1]{0}', space=sflag, size = 0x4, scoped, tag = 'scoped memory for llm_forward.1']
    #allocation5 [shape = 'u8[131072]{0}', space=vmem, size = 0x20000, scoped, tag = 'input window, operand 3, single buffered']
    #allocation6 [shape = 's32[1]{0}', space=sflag, size = 0x4, scoped, tag = 'scoped memory for llm_forward.1']
    #allocation7 [shape = 'u8[8192]{0}', space=vmem, size = 0x2000, scoped, tag = 'output window, operand 0, single buffered']
    %13 = vsyncpa [#allocation3], 0
    %14 = vsyncpa [#allocation6], 0
    %15 = vsyncpa [#allocation4], 0
    // Predicated region
    $region2: #{llm_forward.1} parent=1 // pred_check
      _
    $region3: #{llm_forward.1} parent=1 // pred_check_branch
      %17 = sbr.rel (0) target = $region5
    $region4: #{llm_forward.1} parent=1 // pred_region
      _
    $region5: #{llm_forward.1} parent=1 // pred_fallthru
      _
    // Predicated region
    $region6: #{llm_forward.1} parent=1 // pred_check
      _
    $region7: #{llm_forward.1} parent=1 // pred_check_branch
      %19 = sbr.rel (0) target = $region9
    $region8: #{llm_forward.1} parent=1 // pred_region
      %s21 = ssub.s32 4096, 4096
      %22 = vsyncadd [#allocation3], %s21
      %s23 = sshll.u32 [#allocation2], 4
      %s24 = int_to_ptr.vmem [resolvable:$true] %s23
      %29 = dma.hbm_to_vmem [thread:$0]  %s1, 4096, %s24, [#allocation3], 128, 128, 8
    $region9: #{llm_forward.1} parent=1 // pred_fallthru
      _
    // Predicated region
    $region10: #{llm_forward.1} parent=1 // pred_check
      _
    $region11: #{llm_forward.1} parent=1 // pred_check_branch
      %31 = sbr.rel (0) target = $region13
    $region12: #{llm_forward.1} parent=1 // pred_region
      _
    $region13: #{llm_forward.1} parent=1 // pred_fallthru
      _
    // Predicated region
    $region14: #{llm_forward.1} parent=1 // pred_check
      _
    $region15: #{llm_forward.1} parent=1 // pred_check_branch
      %33 = sbr.rel (0) target = $region17
    $region16: #{llm_forward.1} parent=1 // pred_region
      %s35 = ssub.s32 4096, 4096
      %36 = vsyncadd [#allocation6], %s35
      %s37 = sshll.u32 [#allocation5], 4
      %s38 = int_to_ptr.vmem [resolvable:$true] %s37
      %43 = dma.hbm_to_vmem [thread:$0]  %s3, 4096, %s38, [#allocation6], 128, 128, 8
    $region17: #{llm_forward.1} parent=1 // pred_fallthru
      _
    // Predicated region
    $region18: #{llm_forward.1} parent=1 // pred_check
      _
    $region19: #{llm_forward.1} parent=1 // pred_check_branch
      %45 = sbr.rel (0) target = $region21
    $region20: #{llm_forward.1} parent=1 // pred_region
      _
    $region21: #{llm_forward.1} parent=1 // pred_fallthru
      _
    // Predicated region
    $region22: #{llm_forward.1} parent=1 // pred_check
      _
    $region23: #{llm_forward.1} parent=1 // pred_check_branch
      %47 = sbr.rel (0) target = $region25
    $region24: #{llm_forward.1} parent=1 // pred_region
      _
    $region25: #{llm_forward.1} parent=1 // pred_fallthru
      _
    // Predicated region
    $region26: #{llm_forward.1} parent=1 // pred_check
      _
    $region27: #{llm_forward.1} parent=1 // pred_check_branch
      %49 = sbr.rel (0) target = $region29
    $region28: #{llm_forward.1} parent=1 // pred_region
      _
    $region29: #{llm_forward.1} parent=1 // pred_fallthru
      _
    // Predicated region
    $region30: #{llm_forward.1} parent=1 // pred_check
      _
    $region31: #{llm_forward.1} parent=1 // pred_check_branch
      %51 = sbr.rel (0) target = $region33
    $region32: #{llm_forward.1} parent=1 // pred_region
      _
    $region33: #{llm_forward.1} parent=1 // pred_fallthru
      _
    // Predicated region
    $region34: #{llm_forward.1} parent=1 // pred_check
      _
    $region35: #{llm_forward.1} parent=1 // pred_check_branch
      %53 = sbr.rel (0) target = $region37
    $region36: #{llm_forward.1} parent=1 // pred_region
      %54 = dma.done [#allocation3], 4096
    $region37: #{llm_forward.1} parent=1 // pred_fallthru
      _
    // Predicated region
    $region38: #{llm_forward.1} parent=1 // pred_check
      _
    $region39: #{llm_forward.1} parent=1 // pred_check_branch
      %56 = sbr.rel (0) target = $region41
    $region40: #{llm_forward.1} parent=1 // pred_region
      %57 = dma.done [#allocation6], 4096
    $region41: #{llm_forward.1} parent=1 // pred_fallthru
      _
    %v59 = vld [vmem:[%s0] sm:$0xff]
    %v60 = vld [vmem:[%s0 + $0x8] sm:$0xff]
    %v61 = vlaneseq
    %v62 = vshrl.u32 %v61, 7
    %v63 = vadd.s32 %v62, 8
    %v64 = vlaneseq
    %v65 = vand.u32 %v64, 127
    %vm66 = vcmp.ge.s32.totalorder %v62, 0
    %vm67 = vcmp.ge.s32.totalorder %v63, 0
    %vm68 = vcmp.lt.s32.totalorder %v62, 8
    %vm69 = vcmp.lt.s32.totalorder %v63, 8
    %vm70 = vmand %vm66, %vm68
    %vm71 = vmand %vm67, %vm69
    %vm72 = vcmp.ge.s32.totalorder %v65, 0
    %vm73 = vcmp.lt.s32.totalorder %v65, 8
    %vm74 = vmand %vm72, %vm73
    %vm75 = vmand %vm70, %vm74
    %vm76 = vmand %vm71, %vm74
    %vm77 = vcmp.ge.s32.totalorder %v62, 8
    %vm78 = vcmp.ge.s32.totalorder %v63, 8
    %vm79 = vcmp.lt.s32.totalorder %v62, 16
    %vm80 = vcmp.lt.s32.totalorder %v63, 16
    %vm81 = vmand %vm77, %vm79
    %vm82 = vmand %vm78, %vm80
    %vm83 = vcmp.ge.s32.totalorder %v65, 8
    %vm84 = vcmp.lt.s32.totalorder %v65, 16
    %vm85 = vmand %vm83, %vm84
    %vm86 = vmand %vm81, %vm85
    %vm87 = vmand %vm82, %vm85
    %vm88 = vmor %vm75, %vm86
    %vm89 = vmor %vm76, %vm87
    %vm90 = vcmp.lt.s32.totalorder %v65, %v62
    %vm91 = vcmp.lt.s32.totalorder %v65, %v63
    %vm92 = vmand %vm88, %vm90
    %vm93 = vmand %vm89, %vm91
    %vm94 = vcmp.eq.s32.totalorder %v65, %v62
    %vm95 = vcmp.eq.s32.totalorder %v65, %v63
    %v96 = vsel %vm94, -0.0005, -1e+30
    %v97 = vsel %vm95, -0.0005, -1e+30
    %v98 = vpack.c.bf16 %v60, %v59
    %v99 = vld [vmem:[#allocation2] sm:$0xff]
    %v100 = vld [vmem:[#allocation2 + $0x8] sm:$0xff]
    %v101 = vld [vmem:[#allocation2 + $0x10] sm:$0xff]
    %v102 = vld [vmem:[#allocation2 + $0x18] sm:$0xff]
    %v103 = vld [vmem:[#allocation2 + $0x20] sm:$0xff]
    %v104 = vld [vmem:[#allocation2 + $0x28] sm:$0xff]
    %v105 = vld [vmem:[#allocation2 + $0x30] sm:$0xff]
    %v106 = vld [vmem:[#allocation2 + $0x38] sm:$0xff]
    %v107 = vld [vmem:[#allocation2 + $0x40] sm:$0xff]
    %v108 = vld [vmem:[#allocation2 + $0x48] sm:$0xff]
    %v109 = vld [vmem:[#allocation2 + $0x50] sm:$0xff]
    %v110 = vld [vmem:[#allocation2 + $0x58] sm:$0xff]
    %v111 = vld [vmem:[#allocation2 + $0x60] sm:$0xff]
    %v112 = vld [vmem:[#allocation2 + $0x68] sm:$0xff]
    %v113 = vld [vmem:[#allocation2 + $0x70] sm:$0xff]
    %v114 = vld [vmem:[#allocation2 + $0x78] sm:$0xff]
    %v115 = vpack.c.bf16 %v100, %v99
    %v116 = vpack.c.bf16 %v102, %v101
    %v117 = vpack.c.bf16 %v104, %v103
    %v118 = vpack.c.bf16 %v106, %v105
    %v119 = vpack.c.bf16 %v108, %v107
    %v120 = vpack.c.bf16 %v110, %v109
    %v121 = vpack.c.bf16 %v112, %v111
    %v122 = vpack.c.bf16 %v114, %v113
    %v123 = vld [vmem:[%s2] sm:$0x1]
    %v125 = vlaneseq
    %v126 = vshrl.u32 %v125, 7
    %v127 = vsub.s32 0, %v126
    %v128 = vrot.slane %v123, %v127
    %130 = vmatprep.subr.bf16.mxu0 0
    %131 = vmatpush1.bf16.msra.mxu0 %v115
    %132 = vmatprep.subr.bf16.mxu0 0
    %133 = vmatpush1.bf16.msra.mxu0 %v116
    %134 = vmatprep.subr.bf16.mxu0 0
    %135 = vmatpush1.bf16.msra.mxu0 %v117
    %136 = vmatprep.subr.bf16.mxu0 0
    %137 = vmatpush1.bf16.msra.mxu0 %v118
    %138 = vmatprep.subr.bf16.mxu0 0
    %139 = vmatpush1.bf16.msra.mxu0 %v119
    %140 = vmatprep.subr.bf16.mxu0 0
    %141 = vmatpush1.bf16.msra.mxu0 %v120
    %142 = vmatprep.subr.bf16.mxu0 0
    %143 = vmatpush1.bf16.msra.mxu0 %v121
    %144 = vmatprep.subr.bf16.mxu0 0
    %145 = vmatpush1.bf16.msra.mxu0 %v122
    %146 = vmatprep.subr.bf16.mxu0 0
    %147 = vmatpush1.bf16.msra.mxu0 0
    %148 = vmatprep.subr.bf16.mxu0 0
    %149 = vmatpush1.bf16.msra.mxu0 0
    %150 = vmatprep.subr.bf16.mxu0 0
    %151 = vmatpush1.bf16.msra.mxu0 0
    %152 = vmatprep.subr.bf16.mxu0 0
    %153 = vmatpush1.bf16.msra.mxu0 0
    %154 = vmatprep.subr.bf16.mxu0 0
    %155 = vmatpush1.bf16.msra.mxu0 0
    %156 = vmatprep.subr.bf16.mxu0 0
    %157 = vmatpush1.bf16.msra.mxu0 0
    %158 = vmatprep.subr.bf16.mxu0 0
    %159 = vmatpush1.bf16.msra.mxu0 0
    %160 = vmatprep.subr.bf16.mxu0 0
    %161 = vmatpush1.bf16.msra.mxu0 0
    %162 = vmatprep.mubr.bf16.mxu0 0
    %163 = vmatmul.mubr.bf16.gmra.mrb[0].mxu0 %v98
    %v164 = vpop.f32.mrb[0].mxu0
    %v165 = vadd.f32 %v128, %v164
    %v166 = vpop.f32.mrb[0].mxu0
    %v167 = vpop.f32.mrb[0].mxu0
    %v168 = vadd.f32 %v128, %v167
    %v169 = vpop.f32.mrb[0].mxu0
    %170 = vdwg.mxu0
    %v171 = vmul.f32 %v165, %v165
    %v172 = vmul.f32 %v168, %v168
    %v173 = vmul.f32 %v165, %v171
    %v174 = vmul.f32 %v168, %v172
    %v175 = vmul.f32 %v173, 0.044715
    %v176 = vmul.f32 %v174, 0.044715
    %v177 = vadd.f32 %v165, %v175
    %v178 = vadd.f32 %v168, %v176
    %v179 = vmul.f32 %v177, 0.7978846
    %v180 = vmul.f32 %v178, 0.7978846
    %v181 = vtanh.pop %v179
    %v182 = vtanh.pop %v180
    %v183 = vadd.f32 %v181, 1.0
    %v184 = vadd.f32 %v182, 1.0
    %v185 = vmul.f32 %v183, 0.5
    %v186 = vmul.f32 %v184, 0.5
    %v187 = vmul.f32 %v165, %v185
    %v188 = vmul.f32 %v168, %v186
    %v189 = vpack.c.bf16 %v188, %v187
    %v190 = vld [vmem:[#allocation5] sm:$0xff]
    %v191 = vld [vmem:[#allocation5 + $0x8] sm:$0xff]
    %v192 = vld [vmem:[#allocation5 + $0x10] sm:$0xff]
    %v193 = vld [vmem:[#allocation5 + $0x18] sm:$0xff]
    %v194 = vld [vmem:[#allocation5 + $0x20] sm:$0xff]
    %v195 = vld [vmem:[#allocation5 + $0x28] sm:$0xff]
    %v196 = vld [vmem:[#allocation5 + $0x30] sm:$0xff]
    %v197 = vld [vmem:[#allocation5 + $0x38] sm:$0xff]
    %v198 = vld [vmem:[#allocation5 + $0x40] sm:$0xff]
    %v199 = vld [vmem:[#allocation5 + $0x48] sm:$0xff]
    %v200 = vld [vmem:[#allocation5 + $0x50] sm:$0xff]
    %v201 = vld [vmem:[#allocation5 + $0x58] sm:$0xff]
    %v202 = vld [vmem:[#allocation5 + $0x60] sm:$0xff]
    %v203 = vld [vmem:[#allocation5 + $0x68] sm:$0xff]
    %v204 = vld [vmem:[#allocation5 + $0x70] sm:$0xff]
    %v205 = vld [vmem:[#allocation5 + $0x78] sm:$0xff]
    %v206 = vpack.c.bf16 %v191, %v190
    %v207 = vpack.c.bf16 %v193, %v192
    %v208 = vpack.c.bf16 %v195, %v194
    %v209 = vpack.c.bf16 %v197, %v196
    %v210 = vpack.c.bf16 %v199, %v198
    %v211 = vpack.c.bf16 %v201, %v200
    %v212 = vpack.c.bf16 %v203, %v202
    %v213 = vpack.c.bf16 %v205, %v204
    %v214 = vld [vmem:[%s4] sm:$0x1]
    %v216 = vlaneseq
    %v217 = vshrl.u32 %v216, 7
    %v218 = vsub.s32 0, %v217
    %v219 = vrot.slane %v214, %v218
    %221 = vmatprep.subr.bf16.mxu0 0
    %222 = vmatpush1.bf16.msra.mxu0 %v206
    %223 = vmatprep.subr.bf16.mxu0 0
    %224 = vmatpush1.bf16.msra.mxu0 %v207
    %225 = vmatprep.subr.bf16.mxu0 0
    %226 = vmatpush1.bf16.msra.mxu0 %v208
    %227 = vmatprep.subr.bf16.mxu0 0
    %228 = vmatpush1.bf16.msra.mxu0 %v209
    %229 = vmatprep.subr.bf16.mxu0 0
    %230 = vmatpush1.bf16.msra.mxu0 %v210
    %231 = vmatprep.subr.bf16.mxu0 0
    %232 = vmatpush1.bf16.msra.mxu0 %v211
    %233 = vmatprep.subr.bf16.mxu0 0
    %234 = vmatpush1.bf16.msra.mxu0 %v212
    %235 = vmatprep.subr.bf16.mxu0 0
    %236 = vmatpush1.bf16.msra.mxu0 %v213
    %237 = vmatprep.subr.bf16.mxu0 0
    %238 = vmatpush1.bf16.msra.mxu0 0
    %239 = vmatprep.subr.bf16.mxu0 0
    %240 = vmatpush1.bf16.msra.mxu0 0
    %241 = vmatprep.subr.bf16.mxu0 0
    %242 = vmatpush1.bf16.msra.mxu0 0
    %243 = vmatprep.subr.bf16.mxu0 0
    %244 = vmatpush1.bf16.msra.mxu0 0
    %245 = vmatprep.subr.bf16.mxu0 0
    %246 = vmatpush1.bf16.msra.mxu0 0
    %247 = vmatprep.subr.bf16.mxu0 0
    %248 = vmatpush1.bf16.msra.mxu0 0
    %249 = vmatprep.subr.bf16.mxu0 0
    %250 = vmatpush1.bf16.msra.mxu0 0
    %251 = vmatprep.subr.bf16.mxu0 0
    %252 = vmatpush1.bf16.msra.mxu0 0
    %253 = vmatprep.mubr.bf16.mxu0 0
    %254 = vmatmul.mubr.bf16.gmra.mrb[0].mxu0 %v189
    %v255 = vpop.f32.mrb[0].mxu0
    %v256 = vadd.f32 %v219, %v255
    %v257 = vpop.f32.mrb[0].mxu0
    %v258 = vpop.f32.mrb[0].mxu0
    %v259 = vadd.f32 %v219, %v258
    %v260 = vpop.f32.mrb[0].mxu0
    %261 = vdwg.mxu0
    %v262 = vadd.f32 %v256, %v59
    %v263 = vadd.f32 %v259, %v60
    %v264 = vmul.f32 %v262, 0.17677669
    %v265 = vmul.f32 %v263, 0.17677669
    %v266 = vmul.f32 %v262, %v262
    %v267 = vmul.f32 %v263, %v263
    %268 = vadd.xlane.f32.xlu0 %v266
    %v269 = vpop.xlane.xlu0 %268
    %270 = vadd.xlane.f32.xlu0 %v267
    %v271 = vpop.xlane.xlu0 %270
    %v272 = vmax.f32 %v269, 1e-24
    %v273 = vmax.f32 %v271, 1e-24
    %v274 = vrsqrt.pop %v272
    %v275 = vrsqrt.pop %v273
    %v276 = vmul.f32 %v262, %v274
    %v277 = vmul.f32 %v263, %v275
    %v278 = vpack.c.bf16 %v265, %v264
    %v279 = vpack.c.bf16 %v277, %v276
    %280 = vmatprep.subr.bf16.mxu0 0
    %281 = vmatpush1.bf16.xpose.msra.mxu0 %v279
    %282 = vmatprep.subr.bf16.mxu0 0
    %283 = vmatpush1.bf16.xpose.msra.mxu0 0
    %284 = vmatprep.subr.bf16.mxu0 0
    %285 = vmatpush1.bf16.xpose.msra.mxu0 0
    %286 = vmatprep.subr.bf16.mxu0 0
    %287 = vmatpush1.bf16.xpose.msra.mxu0 0
    %288 = vmatprep.subr.bf16.mxu0 0
    %289 = vmatpush1.bf16.xpose.msra.mxu0 0
    %290 = vmatprep.subr.bf16.mxu0 0
    %291 = vmatpush1.bf16.xpose.msra.mxu0 0
    %292 = vmatprep.subr.bf16.mxu0 0
    %293 = vmatpush1.bf16.xpose.msra.mxu0 0
    %294 = vmatprep.subr.bf16.mxu0 0
    %295 = vmatpush1.bf16.xpose.msra.mxu0 0
    %296 = vmatprep.subr.bf16.mxu0 0
    %297 = vmatpush1.bf16.xpose.msra.mxu0 0
    %298 = vmatprep.subr.bf16.mxu0 0
    %299 = vmatpush1.bf16.xpose.msra.mxu0 0
    %300 = vmatprep.subr.bf16.mxu0 0
    %301 = vmatpush1.bf16.xpose.msra.mxu0 0
    %302 = vmatprep.subr.bf16.mxu0 0
    %303 = vmatpush1.bf16.xpose.msra.mxu0 0
    %304 = vmatprep.subr.bf16.mxu0 0
    %305 = vmatpush1.bf16.xpose.msra.mxu0 0
    %306 = vmatprep.subr.bf16.mxu0 0
    %307 = vmatpush1.bf16.xpose.msra.mxu0 0
    %308 = vmatprep.subr.bf16.mxu0 0
    %309 = vmatpush1.bf16.xpose.msra.mxu0 0
    %310 = vmatprep.subr.bf16.mxu0 0
    %311 = vmatpush1.bf16.xpose.msra.mxu0 0
    %312 = vmatprep.mubr.bf16.mxu0 0
    %313 = vmatmul.mubr.bf16.gmra.mrb[0].mxu0 %v278
    %v314 = vpop.f32.mrb[0].mxu0
    %v315 = vadd.f32 0.0, %v314
    %v316 = vpop.f32.mrb[0].mxu0
    %v317 = vpop.f32.mrb[0].mxu0
    %v318 = vadd.f32 0.0, %v317
    %v319 = vpop.f32.mrb[0].mxu0
    %320 = vdwg.mxu0
    %v321 = vsel %vm92, %v315, %v96
    %v322 = vsel %vm93, %v318, %v97
    %vm323 = vcmask 130048
    %v324 = vsel %vm323, %v321, -inf
    %325 = vmax.xlane.f32.xlu0 %v324
    %v326 = vpop.xlane.xlu0 %325
    %v327 = vsel %vm323, %v322, -inf
    %328 = vmax.xlane.f32.xlu0 %v327
    %v329 = vpop.xlane.xlu0 %328
    %v330 = vsub.f32 %v321, %v326
    %v331 = vsub.f32 %v322, %v329
    %v332 = vmul.f32 %v330, 1.442695
    %v333 = vpow.pop %v332
    %v334 = vmul.f32 %v331, 1.442695
    %v335 = vpow.pop %v334
    %v336 = vsel %vm323, %v333, 0.0
    %337 = vadd.xlane.f32.xlu0 %v336
    %v338 = vpop.xlane.xlu0 %337
    %v339 = vsel %vm323, %v335, 0.0
    %340 = vadd.xlane.f32.xlu0 %v339
    %v341 = vpop.xlane.xlu0 %340
    %v342 = vrcp.pop %v338
    %v343 = vrcp.pop %v341
    %v344 = vmul.f32 %v333, %v342
    %v345 = vmul.f32 %v335, %v343
    %v346 = vpack.c.bf16 %v345, %v344
    %v347 = vpack.c.bf16 %v263, %v262
    %v349 = vsel %vm323, %v346, 0
    %351 = vmatprep.subr.bf16.mxu0 0
    %352 = vmatpush1.bf16.msra.mxu0 %v347
    %353 = vmatprep.subr.bf16.mxu0 0
    %354 = vmatpush1.bf16.msra.mxu0 0
    %355 = vmatprep.subr.bf16.mxu0 0
    %356 = vmatpush1.bf16.msra.mxu0 0
    %357 = vmatprep.subr.bf16.mxu0 0
    %358 = vmatpush1.bf16.msra.mxu0 0
    %359 = vmatprep.subr.bf16.mxu0 0
    %360 = vmatpush1.bf16.msra.mxu0 0
    %361 = vmatprep.subr.bf16.mxu0 0
    %362 = vmatpush1.bf16.msra.mxu0 0
    %363 = vmatprep.subr.bf16.mxu0 0
    %364 = vmatpush1.bf16.msra.mxu0 0
    %365 = vmatprep.subr.bf16.mxu0 0
    %366 = vmatpush1.bf16.msra.mxu0 0
    %367 = vmatprep.subr.bf16.mxu0 0
    %368 = vmatpush1.bf16.msra.mxu0 0
    %369 = vmatprep.subr.bf16.mxu0 0
    %370 = vmatpush1.bf16.msra.mxu0 0
    %371 = vmatprep.subr.bf16.mxu0 0
    %372 = vmatpush1.bf16.msra.mxu0 0
    %373 = vmatprep.subr.bf16.mxu0 0
    %374 = vmatpush1.bf16.msra.mxu0 0
    %375 = vmatprep.subr.bf16.mxu0 0
    %376 = vmatpush1.bf16.msra.mxu0 0
    %377 = vmatprep.subr.bf16.mxu0 0
    %378 = vmatpush1.bf16.msra.mxu0 0
    %379 = vmatprep.subr.bf16.mxu0 0
    %380 = vmatpush1.bf16.msra.mxu0 0
    %381 = vmatprep.subr.bf16.mxu0 0
    %382 = vmatpush1.bf16.msra.mxu0 0
    %383 = vmatprep.mubr.bf16.mxu0 0
    %384 = vmatmul.mubr.bf16.gmra.mrb[0].mxu0 %v349
    %v385 = vpop.f32.mrb[0].mxu0
    %v386 = vadd.f32 %v262, %v385
    %v387 = vpop.f32.mrb[0].mxu0
    %v388 = vpop.f32.mrb[0].mxu0
    %v389 = vadd.f32 %v263, %v388
    %v390 = vpop.f32.mrb[0].mxu0
    %391 = vdwg.mxu0
    %v392 = vpack.c.bf16 %v389, %v386
    %393 = vmatprep.subr.bf16.mxu0 0
    %394 = vmatpush1.bf16.msra.mxu0 %v115
    %395 = vmatprep.subr.bf16.mxu0 0
    %396 = vmatpush1.bf16.msra.mxu0 %v116
    %397 = vmatprep.subr.bf16.mxu0 0
    %398 = vmatpush1.bf16.msra.mxu0 %v117
    %399 = vmatprep.subr.bf16.mxu0 0
    %400 = vmatpush1.bf16.msra.mxu0 %v118
    %401 = vmatprep.subr.bf16.mxu0 0
    %402 = vmatpush1.bf16.msra.mxu0 %v119
    %403 = vmatprep.subr.bf16.mxu0 0
    %404 = vmatpush1.bf16.msra.mxu0 %v120
    %405 = vmatprep.subr.bf16.mxu0 0
    %406 = vmatpush1.bf16.msra.mxu0 %v121
    %407 = vmatprep.subr.bf16.mxu0 0
    %408 = vmatpush1.bf16.msra.mxu0 %v122
    %409 = vmatprep.subr.bf16.mxu0 0
    %410 = vmatpush1.bf16.msra.mxu0 0
    %411 = vmatprep.subr.bf16.mxu0 0
    %412 = vmatpush1.bf16.msra.mxu0 0
    %413 = vmatprep.subr.bf16.mxu0 0
    %414 = vmatpush1.bf16.msra.mxu0 0
    %415 = vmatprep.subr.bf16.mxu0 0
    %416 = vmatpush1.bf16.msra.mxu0 0
    %417 = vmatprep.subr.bf16.mxu0 0
    %418 = vmatpush1.bf16.msra.mxu0 0
    %419 = vmatprep.subr.bf16.mxu0 0
    %420 = vmatpush1.bf16.msra.mxu0 0
    %421 = vmatprep.subr.bf16.mxu0 0
    %422 = vmatpush1.bf16.msra.mxu0 0
    %423 = vmatprep.subr.bf16.mxu0 0
    %424 = vmatpush1.bf16.msra.mxu0 0
    %425 = vmatprep.mubr.bf16.mxu0 0
    %426 = vmatmul.mubr.bf16.gmra.mrb[0].mxu0 %v392
    %v427 = vpop.f32.mrb[0].mxu0
    %v428 = vadd.f32 %v128, %v427
    %v429 = vpop.f32.mrb[0].mxu0
    %v430 = vpop.f32.mrb[0].mxu0
    %v431 = vadd.f32 %v128, %v430
    %v432 = vpop.f32.mrb[0].mxu0
    %433 = vdwg.mxu0
    %v434 = vmul.f32 %v428, %v428
    %v435 = vmul.f32 %v431, %v431
    %v436 = vmul.f32 %v428, %v434
    %v437 = vmul.f32 %v431, %v435
    %v438 = vmul.f32 %v436, 0.044715
    %v439 = vmul.f32 %v437, 0.044715
    %v440 = vadd.f32 %v428, %v438
    %v441 = vadd.f32 %v431, %v439
    %v442 = vmul.f32 %v440, 0.7978846
    %v443 = vmul.f32 %v441, 0.7978846
    %v444 = vtanh.pop %v442
    %v445 = vtanh.pop %v443
    %v446 = vadd.f32 %v444, 1.0
    %v447 = vadd.f32 %v445, 1.0
    %v448 = vmul.f32 %v446, 0.5
    %v449 = vmul.f32 %v447, 0.5
    %v450 = vmul.f32 %v428, %v448
    %v451 = vmul.f32 %v431, %v449
    %v452 = vpack.c.bf16 %v451, %v450
    %453 = vmatprep.subr.bf16.mxu0 0
    %454 = vmatpush1.bf16.msra.mxu0 %v206
    %455 = vmatprep.subr.bf16.mxu0 0
    %456 = vmatpush1.bf16.msra.mxu0 %v207
    %457 = vmatprep.subr.bf16.mxu0 0
    %458 = vmatpush1.bf16.msra.mxu0 %v208
    %459 = vmatprep.subr.bf16.mxu0 0
    %460 = vmatpush1.bf16.msra.mxu0 %v209
    %461 = vmatprep.subr.bf16.mxu0 0
    %462 = vmatpush1.bf16.msra.mxu0 %v210
    %463 = vmatprep.subr.bf16.mxu0 0
    %464 = vmatpush1.bf16.msra.mxu0 %v211
    %465 = vmatprep.subr.bf16.mxu0 0
    %466 = vmatpush1.bf16.msra.mxu0 %v212
    %467 = vmatprep.subr.bf16.mxu0 0
    %468 = vmatpush1.bf16.msra.mxu0 %v213
    %469 = vmatprep.subr.bf16.mxu0 0
    %470 = vmatpush1.bf16.msra.mxu0 0
    %471 = vmatprep.subr.bf16.mxu0 0
    %472 = vmatpush1.bf16.msra.mxu0 0
    %473 = vmatprep.subr.bf16.mxu0 0
    %474 = vmatpush1.bf16.msra.mxu0 0
    %475 = vmatprep.subr.bf16.mxu0 0
    %476 = vmatpush1.bf16.msra.mxu0 0
    %477 = vmatprep.subr.bf16.mxu0 0
    %478 = vmatpush1.bf16.msra.mxu0 0
    %479 = vmatprep.subr.bf16.mxu0 0
    %480 = vmatpush1.bf16.msra.mxu0 0
    %481 = vmatprep.subr.bf16.mxu0 0
    %482 = vmatpush1.bf16.msra.mxu0 0
    %483 = vmatprep.subr.bf16.mxu0 0
    %484 = vmatpush1.bf16.msra.mxu0 0
    %485 = vmatprep.mubr.bf16.mxu0 0
    %486 = vmatmul.mubr.bf16.gmra.mrb[0].mxu0 %v452
    %v487 = vpop.f32.mrb[0].mxu0
    %v488 = vadd.f32 %v219, %v487
    %v489 = vpop.f32.mrb[0].mxu0
    %v490 = vpop.f32.mrb[0].mxu0
    %v491 = vadd.f32 %v219, %v490
    %v492 = vpop.f32.mrb[0].mxu0
    %493 = vdwg.mxu0
    %v494 = vadd.f32 %v488, %v386
    %v495 = vadd.f32 %v491, %v389
    %v496 = vpack.c.bf16 %v495, %v494
    %s497 = scalar_lea.vmem [#allocation2], 128
    %v498 = vld [vmem:[%s497] sm:$0xff]
    %v499 = vld [vmem:[%s497 + $0x8] sm:$0xff]
    %v500 = vld [vmem:[%s497 + $0x10] sm:$0xff]
    %v501 = vld [vmem:[%s497 + $0x18] sm:$0xff]
    %v502 = vld [vmem:[%s497 + $0x20] sm:$0xff]
    %v503 = vld [vmem:[%s497 + $0x28] sm:$0xff]
    %v504 = vld [vmem:[%s497 + $0x30] sm:$0xff]
    %v505 = vld [vmem:[%s497 + $0x38] sm:$0xff]
    %v506 = vld [vmem:[%s497 + $0x40] sm:$0xff]
    %v507 = vld [vmem:[%s497 + $0x48] sm:$0xff]
    %v508 = vld [vmem:[%s497 + $0x50] sm:$0xff]
    %v509 = vld [vmem:[%s497 + $0x58] sm:$0xff]
    %v510 = vld [vmem:[%s497 + $0x60] sm:$0xff]
    %v511 = vld [vmem:[%s497 + $0x68] sm:$0xff]
    %v512 = vld [vmem:[%s497 + $0x70] sm:$0xff]
    %v513 = vld [vmem:[%s497 + $0x78] sm:$0xff]
    %v514 = vpack.c.bf16 %v499, %v498
    %v515 = vpack.c.bf16 %v501, %v500
    %v516 = vpack.c.bf16 %v503, %v502
    %v517 = vpack.c.bf16 %v505, %v504
    %v518 = vpack.c.bf16 %v507, %v506
    %v519 = vpack.c.bf16 %v509, %v508
    %v520 = vpack.c.bf16 %v511, %v510
    %v521 = vpack.c.bf16 %v513, %v512
    %s522 = scalar_lea.vmem %s2, 1
    %v523 = vld [vmem:[%s522] sm:$0x1]
    %v525 = vlaneseq
    %v526 = vshrl.u32 %v525, 7
    %v527 = vsub.s32 0, %v526
    %v528 = vrot.slane %v523, %v527
    %530 = vmatprep.subr.bf16.mxu0 0
    %531 = vmatpush1.bf16.msra.mxu0 %v514
    %532 = vmatprep.subr.bf16.mxu0 0
    %533 = vmatpush1.bf16.msra.mxu0 %v515
    %534 = vmatprep.subr.bf16.mxu0 0
    %535 = vmatpush1.bf16.msra.mxu0 %v516
    %536 = vmatprep.subr.bf16.mxu0 0
    %537 = vmatpush1.bf16.msra.mxu0 %v517
    %538 = vmatprep.subr.bf16.mxu0 0
    %539 = vmatpush1.bf16.msra.mxu0 %v518
    %540 = vmatprep.subr.bf16.mxu0 0
    %541 = vmatpush1.bf16.msra.mxu0 %v519
    %542 = vmatprep.subr.bf16.mxu0 0
    %543 = vmatpush1.bf16.msra.mxu0 %v520
    %544 = vmatprep.subr.bf16.mxu0 0
    %545 = vmatpush1.bf16.msra.mxu0 %v521
    %546 = vmatprep.subr.bf16.mxu0 0
    %547 = vmatpush1.bf16.msra.mxu0 0
    %548 = vmatprep.subr.bf16.mxu0 0
    %549 = vmatpush1.bf16.msra.mxu0 0
    %550 = vmatprep.subr.bf16.mxu0 0
    %551 = vmatpush1.bf16.msra.mxu0 0
    %552 = vmatprep.subr.bf16.mxu0 0
    %553 = vmatpush1.bf16.msra.mxu0 0
    %554 = vmatprep.subr.bf16.mxu0 0
    %555 = vmatpush1.bf16.msra.mxu0 0
    %556 = vmatprep.subr.bf16.mxu0 0
    %557 = vmatpush1.bf16.msra.mxu0 0
    %558 = vmatprep.subr.bf16.mxu0 0
    %559 = vmatpush1.bf16.msra.mxu0 0
    %560 = vmatprep.subr.bf16.mxu0 0
    %561 = vmatpush1.bf16.msra.mxu0 0
    %562 = vmatprep.mubr.bf16.mxu0 0
    %563 = vmatmul.mubr.bf16.gmra.mrb[0].mxu0 %v496
    %v564 = vpop.f32.mrb[0].mxu0
    %v565 = vadd.f32 %v528, %v564
    %v566 = vpop.f32.mrb[0].mxu0
    %v567 = vpop.f32.mrb[0].mxu0
    %v568 = vadd.f32 %v528, %v567
    %v569 = vpop.f32.mrb[0].mxu0
    %570 = vdwg.mxu0
    %v571 = vmul.f32 %v565, %v565
    %v572 = vmul.f32 %v568, %v568
    %v573 = vmul.f32 %v565, %v571
    %v574 = vmul.f32 %v568, %v572
    %v575 = vmul.f32 %v573, 0.044715
    %v576 = vmul.f32 %v574, 0.044715
    %v577 = vadd.f32 %v565, %v575
    %v578 = vadd.f32 %v568, %v576
    %v579 = vmul.f32 %v577, 0.7978846
    %v580 = vmul.f32 %v578, 0.7978846
    %v581 = vtanh.pop %v579
    %v582 = vtanh.pop %v580
    %v583 = vadd.f32 %v581, 1.0
    %v584 = vadd.f32 %v582, 1.0
    %v585 = vmul.f32 %v583, 0.5
    %v586 = vmul.f32 %v584, 0.5
    %v587 = vmul.f32 %v565, %v585
    %v588 = vmul.f32 %v568, %v586
    %v589 = vpack.c.bf16 %v588, %v587
    %s590 = scalar_lea.vmem [#allocation5], 128
    %v591 = vld [vmem:[%s590] sm:$0xff]
    %v592 = vld [vmem:[%s590 + $0x8] sm:$0xff]
    %v593 = vld [vmem:[%s590 + $0x10] sm:$0xff]
    %v594 = vld [vmem:[%s590 + $0x18] sm:$0xff]
    %v595 = vld [vmem:[%s590 + $0x20] sm:$0xff]
    %v596 = vld [vmem:[%s590 + $0x28] sm:$0xff]
    %v597 = vld [vmem:[%s590 + $0x30] sm:$0xff]
    %v598 = vld [vmem:[%s590 + $0x38] sm:$0xff]
    %v599 = vld [vmem:[%s590 + $0x40] sm:$0xff]
    %v600 = vld [vmem:[%s590 + $0x48] sm:$0xff]
    %v601 = vld [vmem:[%s590 + $0x50] sm:$0xff]
    %v602 = vld [vmem:[%s590 + $0x58] sm:$0xff]
    %v603 = vld [vmem:[%s590 + $0x60] sm:$0xff]
    %v604 = vld [vmem:[%s590 + $0x68] sm:$0xff]
    %v605 = vld [vmem:[%s590 + $0x70] sm:$0xff]
    %v606 = vld [vmem:[%s590 + $0x78] sm:$0xff]
    %v607 = vpack.c.bf16 %v592, %v591
    %v608 = vpack.c.bf16 %v594, %v593
    %v609 = vpack.c.bf16 %v596, %v595
    %v610 = vpack.c.bf16 %v598, %v597
    %v611 = vpack.c.bf16 %v600, %v599
    %v612 = vpack.c.bf16 %v602, %v601
    %v613 = vpack.c.bf16 %v604, %v603
    %v614 = vpack.c.bf16 %v606, %v605
    %s615 = scalar_lea.vmem %s4, 1
    %v616 = vld [vmem:[%s615] sm:$0x1]
    %v618 = vlaneseq
    %v619 = vshrl.u32 %v618, 7
    %v620 = vsub.s32 0, %v619
    %v621 = vrot.slane %v616, %v620
    %623 = vmatprep.subr.bf16.mxu0 0
    %624 = vmatpush1.bf16.msra.mxu0 %v607
    %625 = vmatprep.subr.bf16.mxu0 0
    %626 = vmatpush1.bf16.msra.mxu0 %v608
    %627 = vmatprep.subr.bf16.mxu0 0
    %628 = vmatpush1.bf16.msra.mxu0 %v609
    %629 = vmatprep.subr.bf16.mxu0 0
    %630 = vmatpush1.bf16.msra.mxu0 %v610
    %631 = vmatprep.subr.bf16.mxu0 0
    %632 = vmatpush1.bf16.msra.mxu0 %v611
    %633 = vmatprep.subr.bf16.mxu0 0
    %634 = vmatpush1.bf16.msra.mxu0 %v612
    %635 = vmatprep.subr.bf16.mxu0 0
    %636 = vmatpush1.bf16.msra.mxu0 %v613
    %637 = vmatprep.subr.bf16.mxu0 0
    %638 = vmatpush1.bf16.msra.mxu0 %v614
    %639 = vmatprep.subr.bf16.mxu0 0
    %640 = vmatpush1.bf16.msra.mxu0 0
    %641 = vmatprep.subr.bf16.mxu0 0
    %642 = vmatpush1.bf16.msra.mxu0 0
    %643 = vmatprep.subr.bf16.mxu0 0
    %644 = vmatpush1.bf16.msra.mxu0 0
    %645 = vmatprep.subr.bf16.mxu0 0
    %646 = vmatpush1.bf16.msra.mxu0 0
    %647 = vmatprep.subr.bf16.mxu0 0
    %648 = vmatpush1.bf16.msra.mxu0 0
    %649 = vmatprep.subr.bf16.mxu0 0
    %650 = vmatpush1.bf16.msra.mxu0 0
    %651 = vmatprep.subr.bf16.mxu0 0
    %652 = vmatpush1.bf16.msra.mxu0 0
    %653 = vmatprep.subr.bf16.mxu0 0
    %654 = vmatpush1.bf16.msra.mxu0 0
    %655 = vmatprep.mubr.bf16.mxu0 0
    %656 = vmatmul.mubr.bf16.gmra.mrb[0].mxu0 %v589
    %v657 = vpop.f32.mrb[0].mxu0
    %v658 = vadd.f32 %v621, %v657
    %v659 = vpop.f32.mrb[0].mxu0
    %v660 = vpop.f32.mrb[0].mxu0
    %v661 = vadd.f32 %v621, %v660
    %v662 = vpop.f32.mrb[0].mxu0
    %663 = vdwg.mxu0
    %v664 = vadd.f32 %v658, %v494
    %v665 = vadd.f32 %v661, %v495
    %v666 = vmul.f32 %v664, 0.17677669
    %v667 = vmul.f32 %v665, 0.17677669
    %v668 = vmul.f32 %v664, %v664
    %v669 = vmul.f32 %v665, %v665
    %670 = vadd.xlane.f32.xlu0 %v668
    %v671 = vpop.xlane.xlu0 %670
    %672 = vadd.xlane.f32.xlu0 %v669
    %v673 = vpop.xlane.xlu0 %672
    %v674 = vmax.f32 %v671, 1e-24
    %v675 = vmax.f32 %v673, 1e-24
    %v676 = vrsqrt.pop %v674
    %v677 = vrsqrt.pop %v675
    %v678 = vmul.f32 %v664, %v676
    %v679 = vmul.f32 %v665, %v677
    %v680 = vpack.c.bf16 %v667, %v666
    %v681 = vpack.c.bf16 %v679, %v678
    %682 = vmatprep.subr.bf16.mxu0 0
    %683 = vmatpush1.bf16.xpose.msra.mxu0 %v681
    %684 = vmatprep.subr.bf16.mxu0 0
    %685 = vmatpush1.bf16.xpose.msra.mxu0 0
    %686 = vmatprep.subr.bf16.mxu0 0
    %687 = vmatpush1.bf16.xpose.msra.mxu0 0
    %688 = vmatprep.subr.bf16.mxu0 0
    %689 = vmatpush1.bf16.xpose.msra.mxu0 0
    %690 = vmatprep.subr.bf16.mxu0 0
    %691 = vmatpush1.bf16.xpose.msra.mxu0 0
    %692 = vmatprep.subr.bf16.mxu0 0
    %693 = vmatpush1.bf16.xpose.msra.mxu0 0
    %694 = vmatprep.subr.bf16.mxu0 0
    %695 = vmatpush1.bf16.xpose.msra.mxu0 0
    %696 = vmatprep.subr.bf16.mxu0 0
    %697 = vmatpush1.bf16.xpose.msra.mxu0 0
    %698 = vmatprep.subr.bf16.mxu0 0
    %699 = vmatpush1.bf16.xpose.msra.mxu0 0
    %700 = vmatprep.subr.bf16.mxu0 0
    %701 = vmatpush1.bf16.xpose.msra.mxu0 0
    %702 = vmatprep.subr.bf16.mxu0 0
    %703 = vmatpush1.bf16.xpose.msra.mxu0 0
    %704 = vmatprep.subr.bf16.mxu0 0
    %705 = vmatpush1.bf16.xpose.msra.mxu0 0
    %706 = vmatprep.subr.bf16.mxu0 0
    %707 = vmatpush1.bf16.xpose.msra.mxu0 0
    %708 = vmatprep.subr.bf16.mxu0 0
    %709 = vmatpush1.bf16.xpose.msra.mxu0 0
    %710 = vmatprep.subr.bf16.mxu0 0
    %711 = vmatpush1.bf16.xpose.msra.mxu0 0
    %712 = vmatprep.subr.bf16.mxu0 0
    %713 = vmatpush1.bf16.xpose.msra.mxu0 0
    %714 = vmatprep.mubr.bf16.mxu0 0
    %715 = vmatmul.mubr.bf16.gmra.mrb[0].mxu0 %v680
    %v716 = vpop.f32.mrb[0].mxu0
    %v717 = vadd.f32 0.0, %v716
    %v718 = vpop.f32.mrb[0].mxu0
    %v719 = vpop.f32.mrb[0].mxu0
    %v720 = vadd.f32 0.0, %v719
    %v721 = vpop.f32.mrb[0].mxu0
    %722 = vdwg.mxu0
    %v723 = vsel %vm92, %v717, %v96
    %v724 = vsel %vm93, %v720, %v97
    %v725 = vsel %vm323, %v723, -inf
    %726 = vmax.xlane.f32.xlu0 %v725
    %v727 = vpop.xlane.xlu0 %726
    %v728 = vsel %vm323, %v724, -inf
    %729 = vmax.xlane.f32.xlu0 %v728
    %v730 = vpop.xlane.xlu0 %729
    %v731 = vsub.f32 %v723, %v727
    %v732 = vsub.f32 %v724, %v730
    %v733 = vmul.f32 %v731, 1.442695
    %v734 = vpow.pop %v733
    %v735 = vmul.f32 %v732, 1.442695
    %v736 = vpow.pop %v735
    %v737 = vsel %vm323, %v734, 0.0
    %738 = vadd.xlane.f32.xlu0 %v737
    %v739 = vpop.xlane.xlu0 %738
    %v740 = vsel %vm323, %v736, 0.0
    %741 = vadd.xlane.f32.xlu0 %v740
    %v742 = vpop.xlane.xlu0 %741
    %v743 = vrcp.pop %v739
    %v744 = vrcp.pop %v742
    %v745 = vmul.f32 %v734, %v743
    %v746 = vmul.f32 %v736, %v744
    %v747 = vpack.c.bf16 %v746, %v745
    %v748 = vpack.c.bf16 %v665, %v664
    %v750 = vsel %vm323, %v747, 0
    %752 = vmatprep.subr.bf16.mxu0 0
    %753 = vmatpush1.bf16.msra.mxu0 %v748
    %754 = vmatprep.subr.bf16.mxu0 0
    %755 = vmatpush1.bf16.msra.mxu0 0
    %756 = vmatprep.subr.bf16.mxu0 0
    %757 = vmatpush1.bf16.msra.mxu0 0
    %758 = vmatprep.subr.bf16.mxu0 0
    %759 = vmatpush1.bf16.msra.mxu0 0
    %760 = vmatprep.subr.bf16.mxu0 0
    %761 = vmatpush1.bf16.msra.mxu0 0
    %762 = vmatprep.subr.bf16.mxu0 0
    %763 = vmatpush1.bf16.msra.mxu0 0
    %764 = vmatprep.subr.bf16.mxu0 0
    %765 = vmatpush1.bf16.msra.mxu0 0
    %766 = vmatprep.subr.bf16.mxu0 0
    %767 = vmatpush1.bf16.msra.mxu0 0
    %768 = vmatprep.subr.bf16.mxu0 0
    %769 = vmatpush1.bf16.msra.mxu0 0
    %770 = vmatprep.subr.bf16.mxu0 0
    %771 = vmatpush1.bf16.msra.mxu0 0
    %772 = vmatprep.subr.bf16.mxu0 0
    %773 = vmatpush1.bf16.msra.mxu0 0
    %774 = vmatprep.subr.bf16.mxu0 0
    %775 = vmatpush1.bf16.msra.mxu0 0
    %776 = vmatprep.subr.bf16.mxu0 0
    %777 = vmatpush1.bf16.msra.mxu0 0
    %778 = vmatprep.subr.bf16.mxu0 0
    %779 = vmatpush1.bf16.msra.mxu0 0
    %780 = vmatprep.subr.bf16.mxu0 0
    %781 = vmatpush1.bf16.msra.mxu0 0
    %782 = vmatprep.subr.bf16.mxu0 0
    %783 = vmatpush1.bf16.msra.mxu0 0
    %784 = vmatprep.mubr.bf16.mxu0 0
    %785 = vmatmul.mubr.bf16.gmra.mrb[0].mxu0 %v750
    %v786 = vpop.f32.mrb[0].mxu0
    %v787 = vadd.f32 %v664, %v786
    %v788 = vpop.f32.mrb[0].mxu0
    %v789 = vpop.f32.mrb[0].mxu0
    %v790 = vadd.f32 %v665, %v789
    %v791 = vpop.f32.mrb[0].mxu0
    %792 = vdwg.mxu0
    %v793 = vpack.c.bf16 %v790, %v787
    %794 = vmatprep.subr.bf16.mxu0 0
    %795 = vmatpush1.bf16.msra.mxu0 %v514
    %796 = vmatprep.subr.bf16.mxu0 0
    %797 = vmatpush1.bf16.msra.mxu0 %v515
    %798 = vmatprep.subr.bf16.mxu0 0
    %799 = vmatpush1.bf16.msra.mxu0 %v516
    %800 = vmatprep.subr.bf16.mxu0 0
    %801 = vmatpush1.bf16.msra.mxu0 %v517
    %802 = vmatprep.subr.bf16.mxu0 0
    %803 = vmatpush1.bf16.msra.mxu0 %v518
    %804 = vmatprep.subr.bf16.mxu0 0
    %805 = vmatpush1.bf16.msra.mxu0 %v519
    %806 = vmatprep.subr.bf16.mxu0 0
    %807 = vmatpush1.bf16.msra.mxu0 %v520
    %808 = vmatprep.subr.bf16.mxu0 0
    %809 = vmatpush1.bf16.msra.mxu0 %v521
    %810 = vmatprep.subr.bf16.mxu0 0
    %811 = vmatpush1.bf16.msra.mxu0 0
    %812 = vmatprep.subr.bf16.mxu0 0
    %813 = vmatpush1.bf16.msra.mxu0 0
    %814 = vmatprep.subr.bf16.mxu0 0
    %815 = vmatpush1.bf16.msra.mxu0 0
    %816 = vmatprep.subr.bf16.mxu0 0
    %817 = vmatpush1.bf16.msra.mxu0 0
    %818 = vmatprep.subr.bf16.mxu0 0
    %819 = vmatpush1.bf16.msra.mxu0 0
    %820 = vmatprep.subr.bf16.mxu0 0
    %821 = vmatpush1.bf16.msra.mxu0 0
    %822 = vmatprep.subr.bf16.mxu0 0
    %823 = vmatpush1.bf16.msra.mxu0 0
    %824 = vmatprep.subr.bf16.mxu0 0
    %825 = vmatpush1.bf16.msra.mxu0 0
    %826 = vmatprep.mubr.bf16.mxu0 0
    %827 = vmatmul.mubr.bf16.gmra.mrb[0].mxu0 %v793
    %v828 = vpop.f32.mrb[0].mxu0
    %v829 = vadd.f32 %v528, %v828
    %v830 = vpop.f32.mrb[0].mxu0
    %v831 = vpop.f32.mrb[0].mxu0
    %v832 = vadd.f32 %v528, %v831
    %v833 = vpop.f32.mrb[0].mxu0
    %834 = vdwg.mxu0
    %v835 = vmul.f32 %v829, %v829
    %v836 = vmul.f32 %v832, %v832
    %v837 = vmul.f32 %v829, %v835
    %v838 = vmul.f32 %v832, %v836
    %v839 = vmul.f32 %v837, 0.044715
    %v840 = vmul.f32 %v838, 0.044715
    %v841 = vadd.f32 %v829, %v839
    %v842 = vadd.f32 %v832, %v840
    %v843 = vmul.f32 %v841, 0.7978846
    %v844 = vmul.f32 %v842, 0.7978846
    %v845 = vtanh.pop %v843
    %v846 = vtanh.pop %v844
    %v847 = vadd.f32 %v845, 1.0
    %v848 = vadd.f32 %v846, 1.0
    %v849 = vmul.f32 %v847, 0.5
    %v850 = vmul.f32 %v848, 0.5
    %v851 = vmul.f32 %v829, %v849
    %v852 = vmul.f32 %v832, %v850
    %v853 = vpack.c.bf16 %v852, %v851
    %854 = vmatprep.subr.bf16.mxu0 0
    %855 = vmatpush1.bf16.msra.mxu0 %v607
    %856 = vmatprep.subr.bf16.mxu0 0
    %857 = vmatpush1.bf16.msra.mxu0 %v608
    %858 = vmatprep.subr.bf16.mxu0 0
    %859 = vmatpush1.bf16.msra.mxu0 %v609
    %860 = vmatprep.subr.bf16.mxu0 0
    %861 = vmatpush1.bf16.msra.mxu0 %v610
    %862 = vmatprep.subr.bf16.mxu0 0
    %863 = vmatpush1.bf16.msra.mxu0 %v611
    %864 = vmatprep.subr.bf16.mxu0 0
    %865 = vmatpush1.bf16.msra.mxu0 %v612
    %866 = vmatprep.subr.bf16.mxu0 0
    %867 = vmatpush1.bf16.msra.mxu0 %v613
    %868 = vmatprep.subr.bf16.mxu0 0
    %869 = vmatpush1.bf16.msra.mxu0 %v614
    %870 = vmatprep.subr.bf16.mxu0 0
    %871 = vmatpush1.bf16.msra.mxu0 0
    %872 = vmatprep.subr.bf16.mxu0 0
    %873 = vmatpush1.bf16.msra.mxu0 0
    %874 = vmatprep.subr.bf16.mxu0 0
    %875 = vmatpush1.bf16.msra.mxu0 0
    %876 = vmatprep.subr.bf16.mxu0 0
    %877 = vmatpush1.bf16.msra.mxu0 0
    %878 = vmatprep.subr.bf16.mxu0 0
    %879 = vmatpush1.bf16.msra.mxu0 0
    %880 = vmatprep.subr.bf16.mxu0 0
    %881 = vmatpush1.bf16.msra.mxu0 0
    %882 = vmatprep.subr.bf16.mxu0 0
    %883 = vmatpush1.bf16.msra.mxu0 0
    %884 = vmatprep.subr.bf16.mxu0 0
    %885 = vmatpush1.bf16.msra.mxu0 0
    %886 = vmatprep.mubr.bf16.mxu0 0
    %887 = vmatmul.mubr.bf16.gmra.mrb[0].mxu0 %v853
    %v888 = vpop.f32.mrb[0].mxu0
    %v889 = vadd.f32 %v621, %v888
    %v890 = vpop.f32.mrb[0].mxu0
    %v891 = vpop.f32.mrb[0].mxu0
    %v892 = vadd.f32 %v621, %v891
    %v893 = vpop.f32.mrb[0].mxu0
    %894 = vdwg.mxu0
    %v895 = vadd.f32 %v889, %v787
    %v896 = vadd.f32 %v892, %v790
    %v897 = vmul.f32 %v895, %v895
    %v898 = vmul.f32 %v896, %v896
    %899 = vadd.xlane.f32.xlu0 %v897
    %v900 = vpop.xlane.xlu0 %899
    %901 = vadd.xlane.f32.xlu0 %v898
    %v902 = vpop.xlane.xlu0 %901
    %v903 = vrsqrt.pop %v900
    %v904 = vmul.f32 %v900, %v903
    %vm905 = vcmp.eq.f32.partialorder %v900, inf
    %v906 = vsel %vm905, %v900, %v904
    %vm907 = vcmp.eq.f32.partialorder %v900, 0.0
    %v908 = vand.u32 %v900, 2147483648
    %v909 = vsel %vm907, %v908, %v906
    %v910 = vrsqrt.pop %v902
    %v911 = vmul.f32 %v902, %v910
    %vm912 = vcmp.eq.f32.partialorder %v902, inf
    %v913 = vsel %vm912, %v902, %v911
    %vm914 = vcmp.eq.f32.partialorder %v902, 0.0
    %v915 = vand.u32 %v902, 2147483648
    %v916 = vsel %vm914, %v915, %v913
    %v917 = vmul.f32 %v909, 0.17677669
    %v918 = vmul.f32 %v916, 0.17677669
    %v919 = vmax.f32 %v917, 1e-08
    %v920 = vmax.f32 %v918, 1e-08
    %v921 = vrcp.pop %v919
    %v922 = vrcp.pop %v920
    %v923 = vmul.f32 %v895, %v921
    %v924 = vmul.f32 %v896, %v922
    %v925 = vld [vmem:[%s5] sm:$0x1]
    %v927 = vlaneseq
    %v928 = vshrl.u32 %v927, 7
    %v929 = vsub.s32 0, %v928
    %v930 = vrot.slane %v925, %v929
    %v932 = vmul.f32 %v923, %v930
    %v933 = vmul.f32 %v924, %v930
    %v934 = vpack.c.bf16 %v933, %v932
    %v935 = vld [vmem:[%s6] sm:$0xff]
    %v936 = vld [vmem:[%s6 + $0x8] sm:$0xff]
    %v937 = vld [vmem:[%s6 + $0x10] sm:$0xff]
    %v938 = vld [vmem:[%s6 + $0x18] sm:$0xff]
    %v939 = vld [vmem:[%s6 + $0x20] sm:$0xff]
    %v940 = vld [vmem:[%s6 + $0x28] sm:$0xff]
    %v941 = vld [vmem:[%s6 + $0x30] sm:$0xff]
    %v942 = vld [vmem:[%s6 + $0x38] sm:$0xff]
    %v943 = vld [vmem:[%s6 + $0x40] sm:$0xff]
    %v944 = vld [vmem:[%s6 + $0x48] sm:$0xff]
    %v945 = vld [vmem:[%s6 + $0x50] sm:$0xff]
    %v946 = vld [vmem:[%s6 + $0x58] sm:$0xff]
    %v947 = vld [vmem:[%s6 + $0x60] sm:$0xff]
    %v948 = vld [vmem:[%s6 + $0x68] sm:$0xff]
    %v949 = vld [vmem:[%s6 + $0x70] sm:$0xff]
    %v950 = vld [vmem:[%s6 + $0x78] sm:$0xff]
    %v951 = vpack.c.bf16 %v936, %v935
    %v952 = vpack.c.bf16 %v938, %v937
    %v953 = vpack.c.bf16 %v940, %v939
    %v954 = vpack.c.bf16 %v942, %v941
    %v955 = vpack.c.bf16 %v944, %v943
    %v956 = vpack.c.bf16 %v946, %v945
    %v957 = vpack.c.bf16 %v948, %v947
    %v958 = vpack.c.bf16 %v950, %v949
    %v959 = vld [vmem:[%s7] sm:$0x1]
    %v961 = vlaneseq
    %v962 = vshrl.u32 %v961, 7
    %v963 = vsub.s32 0, %v962
    %v964 = vrot.slane %v959, %v963
    %966 = vmatprep.subr.bf16.mxu0 0
    %967 = vmatpush1.bf16.msra.mxu0 %v951
    %968 = vmatprep.subr.bf16.mxu0 0
    %969 = vmatpush1.bf16.msra.mxu0 %v952
    %970 = vmatprep.subr.bf16.mxu0 0
    %971 = vmatpush1.bf16.msra.mxu0 %v953
    %972 = vmatprep.subr.bf16.mxu0 0
    %973 = vmatpush1.bf16.msra.mxu0 %v954
    %974 = vmatprep.subr.bf16.mxu0 0
    %975 = vmatpush1.bf16.msra.mxu0 %v955
    %976 = vmatprep.subr.bf16.mxu0 0
    %977 = vmatpush1.bf16.msra.mxu0 %v956
    %978 = vmatprep.subr.bf16.mxu0 0
    %979 = vmatpush1.bf16.msra.mxu0 %v957
    %980 = vmatprep.subr.bf16.mxu0 0
    %981 = vmatpush1.bf16.msra.mxu0 %v958
    %982 = vmatprep.subr.bf16.mxu0 0
    %983 = vmatpush1.bf16.msra.mxu0 0
    %984 = vmatprep.subr.bf16.mxu0 0
    %985 = vmatpush1.bf16.msra.mxu0 0
    %986 = vmatprep.subr.bf16.mxu0 0
    %987 = vmatpush1.bf16.msra.mxu0 0
    %988 = vmatprep.subr.bf16.mxu0 0
    %989 = vmatpush1.bf16.msra.mxu0 0
    %990 = vmatprep.subr.bf16.mxu0 0
    %991 = vmatpush1.bf16.msra.mxu0 0
    %992 = vmatprep.subr.bf16.mxu0 0
    %993 = vmatpush1.bf16.msra.mxu0 0
    %994 = vmatprep.subr.bf16.mxu0 0
    %995 = vmatpush1.bf16.msra.mxu0 0
    %996 = vmatprep.subr.bf16.mxu0 0
    %997 = vmatpush1.bf16.msra.mxu0 0
    %998 = vmatprep.mubr.bf16.mxu0 0
    %999 = vmatmul.mubr.bf16.gmra.mrb[0].mxu0 %v934
    %v1000 = vpop.f32.mrb[0].mxu0
    %v1001 = vadd.f32 %v964, %v1000
    %v1002 = vpop.f32.mrb[0].mxu0
    %v1003 = vpop.f32.mrb[0].mxu0
    %v1004 = vadd.f32 %v964, %v1003
    %v1005 = vpop.f32.mrb[0].mxu0
    %1006 = vdwg.mxu0
    %1007 = vst [vmem:[#allocation7] sm:$0xff] %v1001
    %1008 = vst [vmem:[#allocation7 + $0x8] sm:$0xff] %v1004
    // Predicated region
    $region42: #{llm_forward.1} parent=1 // pred_check
      _
    $region43: #{llm_forward.1} parent=1 // pred_check_branch
      %1010 = sbr.rel (0) target = $region45
    $region44: #{llm_forward.1} parent=1 // pred_region
      %s1012 = ssub.s32 256, 256
      %1013 = vsyncadd [#allocation4], %s1012
      %s1014 = sshll.u32 [#allocation7], 4
      %s1015 = int_to_ptr.vmem [resolvable:$true] %s1014
      %1020 = dma.vmem_to_hbm [thread:$0]  %s1015, 256, %s8, [#allocation4], 128, 128, 8
    $region45: #{llm_forward.1} parent=1 // pred_fallthru
      _
    // Predicated region
    $region46: #{llm_forward.1} parent=1 // pred_check
      _
    $region47: #{llm_forward.1} parent=1 // pred_check_branch
      %1022 = sbr.rel (0) target = $region49
    $region48: #{llm_forward.1} parent=1 // pred_region
      %1023 = dma.done [#allocation4], 256
    $region49: #{llm_forward.1} parent=1 // pred_fallthru
      _
    %1024 = vsyncpa [#allocation3], 1
    %1025 = vsyncpa [#allocation6], 1
    %1026 = vsyncpa [#allocation4], 1

</llo_original>
